<compile_context>
chip_gen: v5e
topology: v5e:2x2
jax: 0.10.0
libtpu: 0.0.40
codegen_flags: <defaults>
</compile_context>

<pallas_src>
import functools

import jax
import jax.numpy as jnp
from jax.experimental import pallas as pl
from jax.experimental.pallas import tpu as pltpu

# ---- SNN constants (mirroring the PyTorch module's globals) -----------------
THRESH = 0.2
DECAY = 0.25
A = 2.5
TIME_WINDOW = 10                     # module global `time_window`


def _round_up(n, m):
    return ((n + m - 1) // m) * m


# -----------------------------------------------------------------------------
# Fused kernel: fc1 (tall matmul) -> h1 LIF loop -> fc2 (tall matmul) ->
# h2 LIF loop -> mean spike count, all per batch tile.
# -----------------------------------------------------------------------------
def _snn_fused_kernel(gate_ref, x_ref, w1_ref, b1_ref, w2_ref, b2_ref,
                      out_ref, s1_scr, spk_scr, s2_scr, *,
                      ID, win, tb, time_window, matmul_dtype):
    gate = gate_ref[0]                       # SMEM scalar
    Hp = s1_scr.shape[-1]
    Cp = out_ref.shape[-1]
    k = A / (time_window / 2.0)

    # ---- fc1 for ALL timesteps of this batch tile: ONE tall MXU matmul ------
    # x_ref rows are batch-major within the tile: row = bb*win + t.
    xv = x_ref[...]
    if xv.dtype != matmul_dtype:
        xv = xv.astype(matmul_dtype)
    s1_scr[...] = (
        jnp.dot(xv, w1_ref[...], preferred_element_type=jnp.float32)
        + b1_ref[...]
    )

    # ---- layer-1 LIF recurrence (pure VPU; fully unrolled, win is static) ---
    h1_mem = jnp.zeros((tb, Hp), jnp.float32)
    h1_spike = jnp.zeros((tb, Hp), jnp.float32)
    h1_sum = jnp.zeros((tb, Hp), jnp.float32)
    for t in range(win):
        # Rows of timestep t sit at sublane stride `win` in the batch-major
        # scratch; this strided load only depends on the scratch write above
        # (not on the previous iteration), so the scheduler can hoist it off
        # the serial recurrence chain.
        state1 = s1_scr[pl.ds(t, tb, stride=win), :]
        h1_mem = (h1_mem - h1_spike * THRESH) * DECAY + state1
        raw_spike = jnp.where(h1_mem > THRESH, gate, 0.0)       # fused gate
        h1_sum = h1_sum + raw_spike
        if ID:  # static python bool, resolved at trace time
            h1_spike = raw_spike * (h1_sum * k)   # carried AND fed to fc2
        else:
            h1_spike = raw_spike
        # Time-major spike buffer: dense 8-aligned stores -> fc2 sees one tall
        # lane-dense LHS instead of `win` tiny per-step matmuls.
        spk_scr[pl.ds(t * tb, tb), :] = h1_spike

    # ---- fc2 for ALL timesteps: ONE tall MXU matmul (hoisted out of loop) ---
    spk = spk_scr[...]
    if spk.dtype != matmul_dtype:
        spk = spk.astype(matmul_dtype)
    s2_scr[...] = (
        jnp.dot(spk, w2_ref[...], preferred_element_type=jnp.float32)
        + b2_ref[...]
    )

    # ---- layer-2 LIF recurrence (pure VPU; dense aligned per-step loads) ----
    h2_mem = jnp.zeros((tb, Cp), jnp.float32)
    h2_spike = jnp.zeros((tb, Cp), jnp.float32)
    h2_sum = jnp.zeros((tb, Cp), jnp.float32)
    for t in range(win):
        state2 = s2_scr[pl.ds(t * tb, tb), :]
        h2_mem = (h2_mem - h2_spike * THRESH) * DECAY + state2
        h2_spike = jnp.where(h2_mem > THRESH, 1.0, 0.0)
        h2_sum = h2_sum + h2_spike

    out_ref[...] = h2_sum * (1.0 / float(time_window))


def _vmem_estimate(tb, win, Din, Hp, Cp, x_isize, mm_isize):
    xblk = 2 * tb * win * Din * x_isize          # double-buffered x block
    wgt = 2 * (Din * Hp + Hp * Cp) * mm_isize    # weight pipeline buffers
    bias = 2 * (Hp + Cp) * 4
    scr = tb * win * (2 * Hp + Cp) * 4           # s1 + spike + state2 scratch
    outb = 2 * tb * Cp * 4
    return xblk + wgt + bias + scr + outb


def _pick_batch_tile(B, win, Din, Hp, Cp, x_isize, mm_isize, budget_bytes):
    cands = [d for d in range(8, min(B, 512) + 1, 8) if B % d == 0]
    multi = [d for d in cands if B // d >= 2]       # keep >= 2 grid programs
    for d in sorted(multi or cands, reverse=True):
        if _vmem_estimate(d, win, Din, Hp, Cp, x_isize, mm_isize) <= budget_bytes:
            return d
    return min(cands) if cands else B


def snn_forward(x, gate, ID, w1, b1, w2, b2, *, batch_tile=None,
                time_window=TIME_WINDOW, matmul_dtype=jnp.bfloat16,
                vmem_budget_bytes=24 * 2 ** 20):
    """Forward pass of SNN_Model.

    x  : (B, win, Din) float32/bfloat16   (torch layout input[:, step, :])
    gate: python float scalar;  ID: python bool (static)
    w1 : (Din, H),  b1 : (H,) or (1, H)     [fc1, stored as (in, out)]
    w2 : (H, C),    b2 : (C,) or (1, C)     [fc2]
    returns (B, C) float32  ==  h2_sumspike / time_window

    Notes: matmul operands go to the MXU in `matmul_dtype` (bf16 default;
    even f32 operands are decomposed into bf16 passes on TPU), so discrete
    threshold crossings can differ from a fp32 "highest"-precision reference
    on borderline membrane values.  Recurrence math is always f32.
    Hidden/class dims are zero-padded to multiples of 128; padded lanes never
    spike because thresh > 0 and their state stays exactly 0.
    """
    B, win, Din = x.shape
    H = w1.shape[1]
    C = w2.shape[1]
    Hp = _round_up(H, 128)
    Cp = _round_up(C, 128)

    # Keep x in HBM at its native width (no extra conversion pass); the kernel
    # casts the loaded block to matmul_dtype right before the MXU.
    if x.dtype != jnp.bfloat16:
        x = x.astype(jnp.float32)
    x_isize = jnp.dtype(x.dtype).itemsize
    mm_isize = jnp.dtype(matmul_dtype).itemsize

    if batch_tile is None:
        batch_tile = _pick_batch_tile(B, win, Din, Hp, Cp, x_isize, mm_isize,
                                      vmem_budget_bytes)
    tb = batch_tile
    if B % tb != 0:
        raise ValueError("batch must be divisible by batch_tile "
                         "(pad the batch outside the kernel)")
    vmem_est = _vmem_estimate(tb, win, Din, Hp, Cp, x_isize, mm_isize)
    vmem_limit = int(min(64 * 2 ** 20, max(32 * 2 ** 20, vmem_est * 3 // 2)))

    w1 = jnp.asarray(w1, jnp.float32)
    w2 = jnp.asarray(w2, jnp.float32)
    b1 = jnp.reshape(jnp.asarray(b1, jnp.float32), (1, H))
    b2 = jnp.reshape(jnp.asarray(b2, jnp.float32), (1, C))

    # Zero-pad hidden / class dims to lane-dense multiples of 128.
    w1p = jnp.zeros((Din, Hp), jnp.float32).at[:, :H].set(w1).astype(matmul_dtype)
    b1p = jnp.zeros((1, Hp), jnp.float32).at[:, :H].set(b1)
    w2p = jnp.zeros((Hp, Cp), jnp.float32).at[:H, :C].set(w2).astype(matmul_dtype)
    b2p = jnp.zeros((1, Cp), jnp.float32).at[:, :C].set(b2)

    # Free, batch-major reshape: row = b*win + t.
    x2 = x.reshape(B * win, Din)
    gate_arr = jnp.asarray([gate], dtype=jnp.float32)

    kernel = functools.partial(
        _snn_fused_kernel, ID=bool(ID), win=win, tb=tb,
        time_window=time_window, matmul_dtype=matmul_dtype)

    out_p = pl.pallas_call(
        kernel,
        out_shape=jax.ShapeDtypeStruct((B, Cp), jnp.float32),
        grid_spec=pltpu.PrefetchScalarGridSpec(
            num_scalar_prefetch=0,
            grid=(B // tb,),
            in_specs=[
                pl.BlockSpec(memory_space=pltpu.SMEM),              # gate
                pl.BlockSpec((tb * win, Din), lambda i: (i, 0)),    # x rows
                pl.BlockSpec((Din, Hp), lambda i: (0, 0)),          # w1 (resident)
                pl.BlockSpec((1, Hp), lambda i: (0, 0)),            # b1
                pl.BlockSpec((Hp, Cp), lambda i: (0, 0)),           # w2 (resident)
                pl.BlockSpec((1, Cp), lambda i: (0, 0)),            # b2
            ],
            out_specs=pl.BlockSpec((tb, Cp), lambda i: (i, 0)),
            scratch_shapes=[
                pltpu.VMEM((tb * win, Hp), jnp.float32),   # state1 (batch-major)
                pltpu.VMEM((tb * win, Hp), jnp.float32),   # gated spikes (time-major)
                pltpu.VMEM((tb * win, Cp), jnp.float32),   # state2 (time-major)
            ],
        ),
        compiler_params=pltpu.CompilerParams(
            dimension_semantics=("parallel",),
            vmem_limit_bytes=vmem_limit,
        ),
    )(gate_arr, x2, w1p, b1p, w2p, b2p)

    return out_p[:, :C]


def snn_ref(x, gate, ID, w1, b1, w2, b2, time_window=TIME_WINDOW):
    """Pure-JAX fp32 reference mirroring the PyTorch forward."""
    B, win, _ = x.shape
    H = w1.shape[1]
    C = w2.shape[1]
    k = A / (time_window / 2.0)
    b1 = jnp.reshape(b1, (1, H))
    b2 = jnp.reshape(b2, (1, C))
    h1_mem = h1_spike = h1_sum = jnp.zeros((B, H), jnp.float32)
    h2_mem = h2_spike = h2_sum = jnp.zeros((B, C), jnp.float32)
    for t in range(win):
        s1 = jnp.dot(x[:, t, :].astype(jnp.float32), w1, precision="highest") + b1
        h1_mem = (h1_mem - h1_spike * THRESH) * DECAY + s1
        h1_spike = (h1_mem > THRESH).astype(jnp.float32) * gate
        h1_sum = h1_sum + h1_spike
        if ID:
            h1_spike = h1_spike * (h1_sum * k)
        s2 = jnp.dot(h1_spike, w2, precision="highest") + b2
        h2_mem = (h2_mem - h2_spike * THRESH) * DECAY + s2
        h2_spike = (h2_mem > THRESH).astype(jnp.float32)
        h2_sum = h2_sum + h2_spike
    return h2_sum / float(time_window)


def _tolerant_check(out, ref):
    # Spikes are discrete threshold crossings, so a borderline membrane value
    # can flip under tiny matmul-rounding differences and move entries of one
    # batch row by 1/time_window; use tolerant aggregate criteria.
    abs_err = jnp.abs(out - ref)
    mean_err = float(jnp.mean(abs_err))
    match_frac = float(jnp.mean((abs_err < 1e-3).astype(jnp.float32)))
    assert mean_err < 5e-2 and match_frac > 0.9, (mean_err, match_frac)


if __name__ == "__main__":
    # Small shapes consistent with the module: x is (batch, time, input_dim),
    # fc1: input_dim -> hidden, fc2: hidden -> num_classes.
    B, WIN, DIN, H, C = 16, TIME_WINDOW, 256, 128, 10

    key = jax.random.PRNGKey(0)
    kx, kw1, kb1, kw2, kb2 = jax.random.split(key, 5)

    # Deterministic parameter init (torch.nn.Linear-style uniform bounds).
    bound1 = 1.0 / float(jnp.sqrt(jnp.float32(DIN)))
    bound2 = 1.0 / float(jnp.sqrt(jnp.float32(H)))
    w1 = jax.random.uniform(kw1, (DIN, H), jnp.float32, -bound1, bound1)
    b1 = jax.random.uniform(kb1, (1, H), jnp.float32, -bound1, bound1)
    w2 = jax.random.uniform(kw2, (H, C), jnp.float32, -bound2, bound2)
    b2 = jax.random.uniform(kb2, (1, C), jnp.float32, -bound2, bound2)
    x = jax.random.normal(kx, (B, WIN, DIN), jnp.float32)

    gate = 1.0

    # f32 MXU-operand path (closest to the fp32 reference), ID=True.
    out = snn_forward(x, gate, True, w1, b1, w2, b2,
                      matmul_dtype=jnp.float32)
    out = jax.block_until_ready(out)
    assert out.shape == (B, C)
    assert bool(jnp.all(jnp.isfinite(out)))
    _tolerant_check(out, snn_ref(x, gate, True, w1, b1, w2, b2))

    # f32 path, ID=False (spike scaling disabled).
    out_noid = snn_forward(x, gate, False, w1, b1, w2, b2,
                           matmul_dtype=jnp.float32)
    out_noid = jax.block_until_ready(out_noid)
    _tolerant_check(out_noid, snn_ref(x, gate, False, w1, b1, w2, b2))

    # Default bf16 MXU-operand fast path (v5e/v6e/v7x); recurrence stays f32.
    out_bf16 = snn_forward(x, gate, True, w1, b1, w2, b2)
    out_bf16 = jax.block_until_ready(out_bf16)
    assert out_bf16.shape == (B, C)
    assert bool(jnp.all(jnp.isfinite(out_bf16)))

    print("KERNEL_OK")
</pallas_src>

<mosaic_0001>
module attributes {stable_mosaic.version = 11 : i64} {
  func.func @_snn_fused_kernel(%arg0: i32, %arg1: memref<1xf32, #tpu.memory_space<smem>>, %arg2: memref<80x256xf32, #tpu.memory_space<vmem>>, %arg3: memref<256x128xf32, #tpu.memory_space<vmem>>, %arg4: memref<1x128xf32, #tpu.memory_space<vmem>>, %arg5: memref<128x128xf32, #tpu.memory_space<vmem>>, %arg6: memref<1x128xf32, #tpu.memory_space<vmem>>, %arg7: memref<8x128xf32, #tpu.memory_space<vmem>>, %arg8: memref<80x128xf32, #tpu.memory_space<vmem>>, %arg9: memref<80x128xf32, #tpu.memory_space<vmem>>, %arg10: memref<80x128xf32, #tpu.memory_space<vmem>>) attributes {dimension_semantics = [#tpu.dimension_semantics<parallel>], iteration_bounds = array<i64: 2>, scalar_prefetch = 0 : i64, scratch_operands = 3 : i64, tpu.core_type = #tpu.core_type<tc>, window_params = [{transform_indices = @transform_0, window_bounds = array<i64: 1>}, {transform_indices = @transform_1, window_bounds = array<i64: 80, 256>}, {pipeline_mode = #tpu.pipeline_mode<synchronous>, transform_indices = @transform_2, window_bounds = array<i64: 256, 128>}, {pipeline_mode = #tpu.pipeline_mode<synchronous>, transform_indices = @transform_3, window_bounds = array<i64: 1, 128>}, {pipeline_mode = #tpu.pipeline_mode<synchronous>, transform_indices = @transform_4, window_bounds = array<i64: 128, 128>}, {pipeline_mode = #tpu.pipeline_mode<synchronous>, transform_indices = @transform_5, window_bounds = array<i64: 1, 128>}, {transform_indices = @transform_6, window_bounds = array<i64: 8, 128>}]} {
    %c0 = arith.constant 0 : index
    %0 = memref.load %arg1[%c0] : memref<1xf32, #tpu.memory_space<smem>>
    %c0_0 = arith.constant 0 : index
    %c0_1 = arith.constant 0 : index
    %1 = vector.load %arg2[%c0_0, %c0_1] : memref<80x256xf32, #tpu.memory_space<vmem>>, vector<80x256xf32>
    %c0_2 = arith.constant 0 : index
    %c0_3 = arith.constant 0 : index
    %2 = vector.load %arg3[%c0_2, %c0_3] : memref<256x128xf32, #tpu.memory_space<vmem>>, vector<256x128xf32>
    %cst = arith.constant dense<0.000000e+00> : vector<80x128xf32>
    %3 = tpu.matmul %1, %2, %cst {dimension_numbers = #tpu.dot_dimension_numbers<[1], [0], [0], [1], [0, 0, 1, 1], [], []>} : vector<80x256xf32>, vector<256x128xf32>, vector<80x128xf32> -> vector<80x128xf32>
    %c0_4 = arith.constant 0 : index
    %c0_5 = arith.constant 0 : index
    %4 = vector.load %arg4[%c0_4, %c0_5] : memref<1x128xf32, #tpu.memory_space<vmem>>, vector<1x128xf32>
    %5 = vector.broadcast %4 : vector<1x128xf32> to vector<80x128xf32>
    %6 = arith.addf %3, %5 : vector<80x128xf32>
    %c0_6 = arith.constant 0 : index
    %c0_7 = arith.constant 0 : index
    %7 = vector.load %arg8[%c0_6, %c0_7] : memref<80x128xf32, #tpu.memory_space<vmem>>, vector<80x128xf32>
    tpu.vector_store %arg8[%c0_6, %c0_7], %6 {strides = array<i32>} : memref<80x128xf32, #tpu.memory_space<vmem>>, vector<80x128xf32>,
    %cst_8 = arith.constant 0.000000e+00 : f32
    %8 = vector.broadcast %cst_8 : f32 to vector<8x128xf32>
    %cst_9 = arith.constant 0.000000e+00 : f32
    %9 = vector.broadcast %cst_9 : f32 to vector<8x128xf32>
    %cst_10 = arith.constant 0.000000e+00 : f32
    %10 = vector.broadcast %cst_10 : f32 to vector<8x128xf32>
    %c0_11 = arith.constant 0 : index
    %c0_12 = arith.constant 0 : index
    %11 = tpu.strided_load %arg8[%c0_11, %c0_12] {strides = array<i32: 10, 1>} : memref<80x128xf32, #tpu.memory_space<vmem>>, vector<8x128xf32>
    %cst_13 = arith.constant 2.000000e-01 : f32
    %12 = vector.broadcast %cst_13 : f32 to vector<8x128xf32>
    %13 = arith.mulf %9, %12 : vector<8x128xf32>
    %14 = arith.subf %8, %13 : vector<8x128xf32>
    %cst_14 = arith.constant 2.500000e-01 : f32
    %15 = vector.broadcast %cst_14 : f32 to vector<8x128xf32>
    %16 = arith.mulf %14, %15 : vector<8x128xf32>
    %17 = arith.addf %16, %11 : vector<8x128xf32>
    %cst_15 = arith.constant 2.000000e-01 : f32
    %18 = vector.broadcast %cst_15 : f32 to vector<8x128xf32>
    %19 = arith.cmpf ogt, %17, %18 : vector<8x128xf32>
    %cst_16 = arith.constant 0.000000e+00 : f32
    %20 = vector.broadcast %0 : f32 to vector<8x128xf32>
    %21 = vector.broadcast %cst_16 : f32 to vector<8x128xf32>
    %22 = arith.select %19, %20, %21 : vector<8x128xi1>, vector<8x128xf32>
    %23 = arith.addf %10, %22 : vector<8x128xf32>
    %cst_17 = arith.constant 5.000000e-01 : f32
    %24 = vector.broadcast %cst_17 : f32 to vector<8x128xf32>
    %25 = arith.mulf %23, %24 : vector<8x128xf32>
    %26 = arith.mulf %22, %25 : vector<8x128xf32>
    %c0_18 = arith.constant 0 : index
    %c0_19 = arith.constant 0 : index
    %27 = vector.load %arg9[%c0_18, %c0_19] : memref<80x128xf32, #tpu.memory_space<vmem>>, vector<8x128xf32>
    tpu.vector_store %arg9[%c0_18, %c0_19], %26 {strides = array<i32>} : memref<80x128xf32, #tpu.memory_space<vmem>>, vector<8x128xf32>,
    %c1 = arith.constant 1 : index
    %c0_20 = arith.constant 0 : index
    %28 = tpu.strided_load %arg8[%c1, %c0_20] {strides = array<i32: 10, 1>} : memref<80x128xf32, #tpu.memory_space<vmem>>, vector<8x128xf32>
    %cst_21 = arith.constant 2.000000e-01 : f32
    %29 = vector.broadcast %cst_21 : f32 to vector<8x128xf32>
    %30 = arith.mulf %26, %29 : vector<8x128xf32>
    %31 = arith.subf %17, %30 : vector<8x128xf32>
    %cst_22 = arith.constant 2.500000e-01 : f32
    %32 = vector.broadcast %cst_22 : f32 to vector<8x128xf32>
    %33 = arith.mulf %31, %32 : vector<8x128xf32>
    %34 = arith.addf %33, %28 : vector<8x128xf32>
    %cst_23 = arith.constant 2.000000e-01 : f32
    %35 = vector.broadcast %cst_23 : f32 to vector<8x128xf32>
    %36 = arith.cmpf ogt, %34, %35 : vector<8x128xf32>
    %cst_24 = arith.constant 0.000000e+00 : f32
    %37 = vector.broadcast %0 : f32 to vector<8x128xf32>
    %38 = vector.broadcast %cst_24 : f32 to vector<8x128xf32>
    %39 = arith.select %36, %37, %38 : vector<8x128xi1>, vector<8x128xf32>
    %40 = arith.addf %23, %39 : vector<8x128xf32>
    %cst_25 = arith.constant 5.000000e-01 : f32
    %41 = vector.broadcast %cst_25 : f32 to vector<8x128xf32>
    %42 = arith.mulf %40, %41 : vector<8x128xf32>
    %43 = arith.mulf %39, %42 : vector<8x128xf32>
    %c8 = arith.constant 8 : index
    %c0_26 = arith.constant 0 : index
    %44 = vector.load %arg9[%c8, %c0_26] : memref<80x128xf32, #tpu.memory_space<vmem>>, vector<8x128xf32>
    tpu.vector_store %arg9[%c8, %c0_26], %43 {strides = array<i32>} : memref<80x128xf32, #tpu.memory_space<vmem>>, vector<8x128xf32>,
    %c2 = arith.constant 2 : index
    %c0_27 = arith.constant 0 : index
    %45 = tpu.strided_load %arg8[%c2, %c0_27] {strides = array<i32: 10, 1>} : memref<80x128xf32, #tpu.memory_space<vmem>>, vector<8x128xf32>
    %cst_28 = arith.constant 2.000000e-01 : f32
    %46 = vector.broadcast %cst_28 : f32 to vector<8x128xf32>
    %47 = arith.mulf %43, %46 : vector<8x128xf32>
    %48 = arith.subf %34, %47 : vector<8x128xf32>
    %cst_29 = arith.constant 2.500000e-01 : f32
    %49 = vector.broadcast %cst_29 : f32 to vector<8x128xf32>
    %50 = arith.mulf %48, %49 : vector<8x128xf32>
    %51 = arith.addf %50, %45 : vector<8x128xf32>
    %cst_30 = arith.constant 2.000000e-01 : f32
    %52 = vector.broadcast %cst_30 : f32 to vector<8x128xf32>
    %53 = arith.cmpf ogt, %51, %52 : vector<8x128xf32>
    %cst_31 = arith.constant 0.000000e+00 : f32
    %54 = vector.broadcast %0 : f32 to vector<8x128xf32>
    %55 = vector.broadcast %cst_31 : f32 to vector<8x128xf32>
    %56 = arith.select %53, %54, %55 : vector<8x128xi1>, vector<8x128xf32>
    %57 = arith.addf %40, %56 : vector<8x128xf32>
    %cst_32 = arith.constant 5.000000e-01 : f32
    %58 = vector.broadcast %cst_32 : f32 to vector<8x128xf32>
    %59 = arith.mulf %57, %58 : vector<8x128xf32>
    %60 = arith.mulf %56, %59 : vector<8x128xf32>
    %c16 = arith.constant 16 : index
    %c0_33 = arith.constant 0 : index
    %61 = vector.load %arg9[%c16, %c0_33] : memref<80x128xf32, #tpu.memory_space<vmem>>, vector<8x128xf32>
    tpu.vector_store %arg9[%c16, %c0_33], %60 {strides = array<i32>} : memref<80x128xf32, #tpu.memory_space<vmem>>, vector<8x128xf32>,
    %c3 = arith.constant 3 : index
    %c0_34 = arith.constant 0 : index
    %62 = tpu.strided_load %arg8[%c3, %c0_34] {strides = array<i32: 10, 1>} : memref<80x128xf32, #tpu.memory_space<vmem>>, vector<8x128xf32>
    %cst_35 = arith.constant 2.000000e-01 : f32
    %63 = vector.broadcast %cst_35 : f32 to vector<8x128xf32>
    %64 = arith.mulf %60, %63 : vector<8x128xf32>
    %65 = arith.subf %51, %64 : vector<8x128xf32>
    %cst_36 = arith.constant 2.500000e-01 : f32
    %66 = vector.broadcast %cst_36 : f32 to vector<8x128xf32>
    %67 = arith.mulf %65, %66 : vector<8x128xf32>
    %68 = arith.addf %67, %62 : vector<8x128xf32>
    %cst_37 = arith.constant 2.000000e-01 : f32
    %69 = vector.broadcast %cst_37 : f32 to vector<8x128xf32>
    %70 = arith.cmpf ogt, %68, %69 : vector<8x128xf32>
    %cst_38 = arith.constant 0.000000e+00 : f32
    %71 = vector.broadcast %0 : f32 to vector<8x128xf32>
    %72 = vector.broadcast %cst_38 : f32 to vector<8x128xf32>
    %73 = arith.select %70, %71, %72 : vector<8x128xi1>, vector<8x128xf32>
    %74 = arith.addf %57, %73 : vector<8x128xf32>
    %cst_39 = arith.constant 5.000000e-01 : f32
    %75 = vector.broadcast %cst_39 : f32 to vector<8x128xf32>
    %76 = arith.mulf %74, %75 : vector<8x128xf32>
    %77 = arith.mulf %73, %76 : vector<8x128xf32>
    %c24 = arith.constant 24 : index
    %c0_40 = arith.constant 0 : index
    %78 = vector.load %arg9[%c24, %c0_40] : memref<80x128xf32, #tpu.memory_space<vmem>>, vector<8x128xf32>
    tpu.vector_store %arg9[%c24, %c0_40], %77 {strides = array<i32>} : memref<80x128xf32, #tpu.memory_space<vmem>>, vector<8x128xf32>,
    %c4 = arith.constant 4 : index
    %c0_41 = arith.constant 0 : index
    %79 = tpu.strided_load %arg8[%c4, %c0_41] {strides = array<i32: 10, 1>} : memref<80x128xf32, #tpu.memory_space<vmem>>, vector<8x128xf32>
    %cst_42 = arith.constant 2.000000e-01 : f32
    %80 = vector.broadcast %cst_42 : f32 to vector<8x128xf32>
    %81 = arith.mulf %77, %80 : vector<8x128xf32>
    %82 = arith.subf %68, %81 : vector<8x128xf32>
    %cst_43 = arith.constant 2.500000e-01 : f32
    %83 = vector.broadcast %cst_43 : f32 to vector<8x128xf32>
    %84 = arith.mulf %82, %83 : vector<8x128xf32>
    %85 = arith.addf %84, %79 : vector<8x128xf32>
    %cst_44 = arith.constant 2.000000e-01 : f32
    %86 = vector.broadcast %cst_44 : f32 to vector<8x128xf32>
    %87 = arith.cmpf ogt, %85, %86 : vector<8x128xf32>
    %cst_45 = arith.constant 0.000000e+00 : f32
    %88 = vector.broadcast %0 : f32 to vector<8x128xf32>
    %89 = vector.broadcast %cst_45 : f32 to vector<8x128xf32>
    %90 = arith.select %87, %88, %89 : vector<8x128xi1>, vector<8x128xf32>
    %91 = arith.addf %74, %90 : vector<8x128xf32>
    %cst_46 = arith.constant 5.000000e-01 : f32
    %92 = vector.broadcast %cst_46 : f32 to vector<8x128xf32>
    %93 = arith.mulf %91, %92 : vector<8x128xf32>
    %94 = arith.mulf %90, %93 : vector<8x128xf32>
    %c32 = arith.constant 32 : index
    %c0_47 = arith.constant 0 : index
    %95 = vector.load %arg9[%c32, %c0_47] : memref<80x128xf32, #tpu.memory_space<vmem>>, vector<8x128xf32>
    tpu.vector_store %arg9[%c32, %c0_47], %94 {strides = array<i32>} : memref<80x128xf32, #tpu.memory_space<vmem>>, vector<8x128xf32>,
    %c5 = arith.constant 5 : index
    %c0_48 = arith.constant 0 : index
    %96 = tpu.strided_load %arg8[%c5, %c0_48] {strides = array<i32: 10, 1>} : memref<80x128xf32, #tpu.memory_space<vmem>>, vector<8x128xf32>
    %cst_49 = arith.constant 2.000000e-01 : f32
    %97 = vector.broadcast %cst_49 : f32 to vector<8x128xf32>
    %98 = arith.mulf %94, %97 : vector<8x128xf32>
    %99 = arith.subf %85, %98 : vector<8x128xf32>
    %cst_50 = arith.constant 2.500000e-01 : f32
    %100 = vector.broadcast %cst_50 : f32 to vector<8x128xf32>
    %101 = arith.mulf %99, %100 : vector<8x128xf32>
    %102 = arith.addf %101, %96 : vector<8x128xf32>
    %cst_51 = arith.constant 2.000000e-01 : f32
    %103 = vector.broadcast %cst_51 : f32 to vector<8x128xf32>
    %104 = arith.cmpf ogt, %102, %103 : vector<8x128xf32>
    %cst_52 = arith.constant 0.000000e+00 : f32
    %105 = vector.broadcast %0 : f32 to vector<8x128xf32>
    %106 = vector.broadcast %cst_52 : f32 to vector<8x128xf32>
    %107 = arith.select %104, %105, %106 : vector<8x128xi1>, vector<8x128xf32>
    %108 = arith.addf %91, %107 : vector<8x128xf32>
    %cst_53 = arith.constant 5.000000e-01 : f32
    %109 = vector.broadcast %cst_53 : f32 to vector<8x128xf32>
    %110 = arith.mulf %108, %109 : vector<8x128xf32>
    %111 = arith.mulf %107, %110 : vector<8x128xf32>
    %c40 = arith.constant 40 : index
    %c0_54 = arith.constant 0 : index
    %112 = vector.load %arg9[%c40, %c0_54] : memref<80x128xf32, #tpu.memory_space<vmem>>, vector<8x128xf32>
    tpu.vector_store %arg9[%c40, %c0_54], %111 {strides = array<i32>} : memref<80x128xf32, #tpu.memory_space<vmem>>, vector<8x128xf32>,
    %c6 = arith.constant 6 : index
    %c0_55 = arith.constant 0 : index
    %113 = tpu.strided_load %arg8[%c6, %c0_55] {strides = array<i32: 10, 1>} : memref<80x128xf32, #tpu.memory_space<vmem>>, vector<8x128xf32>
    %cst_56 = arith.constant 2.000000e-01 : f32
    %114 = vector.broadcast %cst_56 : f32 to vector<8x128xf32>
    %115 = arith.mulf %111, %114 : vector<8x128xf32>
    %116 = arith.subf %102, %115 : vector<8x128xf32>
    %cst_57 = arith.constant 2.500000e-01 : f32
    %117 = vector.broadcast %cst_57 : f32 to vector<8x128xf32>
    %118 = arith.mulf %116, %117 : vector<8x128xf32>
    %119 = arith.addf %118, %113 : vector<8x128xf32>
    %cst_58 = arith.constant 2.000000e-01 : f32
    %120 = vector.broadcast %cst_58 : f32 to vector<8x128xf32>
    %121 = arith.cmpf ogt, %119, %120 : vector<8x128xf32>
    %cst_59 = arith.constant 0.000000e+00 : f32
    %122 = vector.broadcast %0 : f32 to vector<8x128xf32>
    %123 = vector.broadcast %cst_59 : f32 to vector<8x128xf32>
    %124 = arith.select %121, %122, %123 : vector<8x128xi1>, vector<8x128xf32>
    %125 = arith.addf %108, %124 : vector<8x128xf32>
    %cst_60 = arith.constant 5.000000e-01 : f32
    %126 = vector.broadcast %cst_60 : f32 to vector<8x128xf32>
    %127 = arith.mulf %125, %126 : vector<8x128xf32>
    %128 = arith.mulf %124, %127 : vector<8x128xf32>
    %c48 = arith.constant 48 : index
    %c0_61 = arith.constant 0 : index
    %129 = vector.load %arg9[%c48, %c0_61] : memref<80x128xf32, #tpu.memory_space<vmem>>, vector<8x128xf32>
    tpu.vector_store %arg9[%c48, %c0_61], %128 {strides = array<i32>} : memref<80x128xf32, #tpu.memory_space<vmem>>, vector<8x128xf32>,
    %c7 = arith.constant 7 : index
    %c0_62 = arith.constant 0 : index
    %130 = tpu.strided_load %arg8[%c7, %c0_62] {strides = array<i32: 10, 1>} : memref<80x128xf32, #tpu.memory_space<vmem>>, vector<8x128xf32>
    %cst_63 = arith.constant 2.000000e-01 : f32
    %131 = vector.broadcast %cst_63 : f32 to vector<8x128xf32>
    %132 = arith.mulf %128, %131 : vector<8x128xf32>
    %133 = arith.subf %119, %132 : vector<8x128xf32>
    %cst_64 = arith.constant 2.500000e-01 : f32
    %134 = vector.broadcast %cst_64 : f32 to vector<8x128xf32>
    %135 = arith.mulf %133, %134 : vector<8x128xf32>
    %136 = arith.addf %135, %130 : vector<8x128xf32>
    %cst_65 = arith.constant 2.000000e-01 : f32
    %137 = vector.broadcast %cst_65 : f32 to vector<8x128xf32>
    %138 = arith.cmpf ogt, %136, %137 : vector<8x128xf32>
    %cst_66 = arith.constant 0.000000e+00 : f32
    %139 = vector.broadcast %0 : f32 to vector<8x128xf32>
    %140 = vector.broadcast %cst_66 : f32 to vector<8x128xf32>
    %141 = arith.select %138, %139, %140 : vector<8x128xi1>, vector<8x128xf32>
    %142 = arith.addf %125, %141 : vector<8x128xf32>
    %cst_67 = arith.constant 5.000000e-01 : f32
    %143 = vector.broadcast %cst_67 : f32 to vector<8x128xf32>
    %144 = arith.mulf %142, %143 : vector<8x128xf32>
    %145 = arith.mulf %141, %144 : vector<8x128xf32>
    %c56 = arith.constant 56 : index
    %c0_68 = arith.constant 0 : index
    %146 = vector.load %arg9[%c56, %c0_68] : memref<80x128xf32, #tpu.memory_space<vmem>>, vector<8x128xf32>
    tpu.vector_store %arg9[%c56, %c0_68], %145 {strides = array<i32>} : memref<80x128xf32, #tpu.memory_space<vmem>>, vector<8x128xf32>,
    %c8_69 = arith.constant 8 : index
    %c0_70 = arith.constant 0 : index
    %147 = tpu.strided_load %arg8[%c8_69, %c0_70] {strides = array<i32: 10, 1>} : memref<80x128xf32, #tpu.memory_space<vmem>>, vector<8x128xf32>
    %cst_71 = arith.constant 2.000000e-01 : f32
    %148 = vector.broadcast %cst_71 : f32 to vector<8x128xf32>
    %149 = arith.mulf %145, %148 : vector<8x128xf32>
    %150 = arith.subf %136, %149 : vector<8x128xf32>
    %cst_72 = arith.constant 2.500000e-01 : f32
    %151 = vector.broadcast %cst_72 : f32 to vector<8x128xf32>
    %152 = arith.mulf %150, %151 : vector<8x128xf32>
    %153 = arith.addf %152, %147 : vector<8x128xf32>
    %cst_73 = arith.constant 2.000000e-01 : f32
    %154 = vector.broadcast %cst_73 : f32 to vector<8x128xf32>
    %155 = arith.cmpf ogt, %153, %154 : vector<8x128xf32>
    %cst_74 = arith.constant 0.000000e+00 : f32
    %156 = vector.broadcast %0 : f32 to vector<8x128xf32>
    %157 = vector.broadcast %cst_74 : f32 to vector<8x128xf32>
    %158 = arith.select %155, %156, %157 : vector<8x128xi1>, vector<8x128xf32>
    %159 = arith.addf %142, %158 : vector<8x128xf32>
    %cst_75 = arith.constant 5.000000e-01 : f32
    %160 = vector.broadcast %cst_75 : f32 to vector<8x128xf32>
    %161 = arith.mulf %159, %160 : vector<8x128xf32>
    %162 = arith.mulf %158, %161 : vector<8x128xf32>
    %c64 = arith.constant 64 : index
    %c0_76 = arith.constant 0 : index
    %163 = vector.load %arg9[%c64, %c0_76] : memref<80x128xf32, #tpu.memory_space<vmem>>, vector<8x128xf32>
    tpu.vector_store %arg9[%c64, %c0_76], %162 {strides = array<i32>} : memref<80x128xf32, #tpu.memory_space<vmem>>, vector<8x128xf32>,
    %c9 = arith.constant 9 : index
    %c0_77 = arith.constant 0 : index
    %164 = tpu.strided_load %arg8[%c9, %c0_77] {strides = array<i32: 10, 1>} : memref<80x128xf32, #tpu.memory_space<vmem>>, vector<8x128xf32>
    %cst_78 = arith.constant 2.000000e-01 : f32
    %165 = vector.broadcast %cst_78 : f32 to vector<8x128xf32>
    %166 = arith.mulf %162, %165 : vector<8x128xf32>
    %167 = arith.subf %153, %166 : vector<8x128xf32>
    %cst_79 = arith.constant 2.500000e-01 : f32
    %168 = vector.broadcast %cst_79 : f32 to vector<8x128xf32>
    %169 = arith.mulf %167, %168 : vector<8x128xf32>
    %170 = arith.addf %169, %164 : vector<8x128xf32>
    %cst_80 = arith.constant 2.000000e-01 : f32
    %171 = vector.broadcast %cst_80 : f32 to vector<8x128xf32>
    %172 = arith.cmpf ogt, %170, %171 : vector<8x128xf32>
    %cst_81 = arith.constant 0.000000e+00 : f32
    %173 = vector.broadcast %0 : f32 to vector<8x128xf32>
    %174 = vector.broadcast %cst_81 : f32 to vector<8x128xf32>
    %175 = arith.select %172, %173, %174 : vector<8x128xi1>, vector<8x128xf32>
    %176 = arith.addf %159, %175 : vector<8x128xf32>
    %cst_82 = arith.constant 5.000000e-01 : f32
    %177 = vector.broadcast %cst_82 : f32 to vector<8x128xf32>
    %178 = arith.mulf %176, %177 : vector<8x128xf32>
    %179 = arith.mulf %175, %178 : vector<8x128xf32>
    %c72 = arith.constant 72 : index
    %c0_83 = arith.constant 0 : index
    %180 = vector.load %arg9[%c72, %c0_83] : memref<80x128xf32, #tpu.memory_space<vmem>>, vector<8x128xf32>
    tpu.vector_store %arg9[%c72, %c0_83], %179 {strides = array<i32>} : memref<80x128xf32, #tpu.memory_space<vmem>>, vector<8x128xf32>,
    %c0_84 = arith.constant 0 : index
    %c0_85 = arith.constant 0 : index
    %181 = vector.load %arg9[%c0_84, %c0_85] : memref<80x128xf32, #tpu.memory_space<vmem>>, vector<80x128xf32>
    %c0_86 = arith.constant 0 : index
    %c0_87 = arith.constant 0 : index
    %182 = vector.load %arg5[%c0_86, %c0_87] : memref<128x128xf32, #tpu.memory_space<vmem>>, vector<128x128xf32>
    %cst_88 = arith.constant dense<0.000000e+00> : vector<80x128xf32>
    %183 = tpu.matmul %181, %182, %cst_88 {dimension_numbers = #tpu.dot_dimension_numbers<[1], [0], [0], [1], [0, 0, 1, 1], [], []>} : vector<80x128xf32>, vector<128x128xf32>, vector<80x128xf32> -> vector<80x128xf32>
    %c0_89 = arith.constant 0 : index
    %c0_90 = arith.constant 0 : index
    %184 = vector.load %arg6[%c0_89, %c0_90] : memref<1x128xf32, #tpu.memory_space<vmem>>, vector<1x128xf32>
    %185 = vector.broadcast %184 : vector<1x128xf32> to vector<80x128xf32>
    %186 = arith.addf %183, %185 : vector<80x128xf32>
    %c0_91 = arith.constant 0 : index
    %c0_92 = arith.constant 0 : index
    %187 = vector.load %arg10[%c0_91, %c0_92] : memref<80x128xf32, #tpu.memory_space<vmem>>, vector<80x128xf32>
    tpu.vector_store %arg10[%c0_91, %c0_92], %186 {strides = array<i32>} : memref<80x128xf32, #tpu.memory_space<vmem>>, vector<80x128xf32>,
    %cst_93 = arith.constant 0.000000e+00 : f32
    %188 = vector.broadcast %cst_93 : f32 to vector<8x128xf32>
    %cst_94 = arith.constant 0.000000e+00 : f32
    %189 = vector.broadcast %cst_94 : f32 to vector<8x128xf32>
    %cst_95 = arith.constant 0.000000e+00 : f32
    %190 = vector.broadcast %cst_95 : f32 to vector<8x128xf32>
    %c0_96 = arith.constant 0 : index
    %c0_97 = arith.constant 0 : index
    %191 = vector.load %arg10[%c0_96, %c0_97] : memref<80x128xf32, #tpu.memory_space<vmem>>, vector<8x128xf32>
    %cst_98 = arith.constant 2.000000e-01 : f32
    %192 = vector.broadcast %cst_98 : f32 to vector<8x128xf32>
    %193 = arith.mulf %189, %192 : vector<8x128xf32>
    %194 = arith.subf %188, %193 : vector<8x128xf32>
    %cst_99 = arith.constant 2.500000e-01 : f32
    %195 = vector.broadcast %cst_99 : f32 to vector<8x128xf32>
    %196 = arith.mulf %194, %195 : vector<8x128xf32>
    %197 = arith.addf %196, %191 : vector<8x128xf32>
    %cst_100 = arith.constant 2.000000e-01 : f32
    %198 = vector.broadcast %cst_100 : f32 to vector<8x128xf32>
    %199 = arith.cmpf ogt, %197, %198 : vector<8x128xf32>
    %cst_101 = arith.constant 1.000000e+00 : f32
    %cst_102 = arith.constant 0.000000e+00 : f32
    %200 = vector.broadcast %cst_101 : f32 to vector<8x128xf32>
    %201 = vector.broadcast %cst_102 : f32 to vector<8x128xf32>
    %202 = arith.select %199, %200, %201 : vector<8x128xi1>, vector<8x128xf32>
    %203 = arith.addf %190, %202 : vector<8x128xf32>
    %c8_103 = arith.constant 8 : index
    %c0_104 = arith.constant 0 : index
    %204 = vector.load %arg10[%c8_103, %c0_104] : memref<80x128xf32, #tpu.memory_space<vmem>>, vector<8x128xf32>
    %cst_105 = arith.constant 2.000000e-01 : f32
    %205 = vector.broadcast %cst_105 : f32 to vector<8x128xf32>
    %206 = arith.mulf %202, %205 : vector<8x128xf32>
    %207 = arith.subf %197, %206 : vector<8x128xf32>
    %cst_106 = arith.constant 2.500000e-01 : f32
    %208 = vector.broadcast %cst_106 : f32 to vector<8x128xf32>
    %209 = arith.mulf %207, %208 : vector<8x128xf32>
    %210 = arith.addf %209, %204 : vector<8x128xf32>
    %cst_107 = arith.constant 2.000000e-01 : f32
    %211 = vector.broadcast %cst_107 : f32 to vector<8x128xf32>
    %212 = arith.cmpf ogt, %210, %211 : vector<8x128xf32>
    %cst_108 = arith.constant 1.000000e+00 : f32
    %cst_109 = arith.constant 0.000000e+00 : f32
    %213 = vector.broadcast %cst_108 : f32 to vector<8x128xf32>
    %214 = vector.broadcast %cst_109 : f32 to vector<8x128xf32>
    %215 = arith.select %212, %213, %214 : vector<8x128xi1>, vector<8x128xf32>
    %216 = arith.addf %203, %215 : vector<8x128xf32>
    %c16_110 = arith.constant 16 : index
    %c0_111 = arith.constant 0 : index
    %217 = vector.load %arg10[%c16_110, %c0_111] : memref<80x128xf32, #tpu.memory_space<vmem>>, vector<8x128xf32>
    %cst_112 = arith.constant 2.000000e-01 : f32
    %218 = vector.broadcast %cst_112 : f32 to vector<8x128xf32>
    %219 = arith.mulf %215, %218 : vector<8x128xf32>
    %220 = arith.subf %210, %219 : vector<8x128xf32>
    %cst_113 = arith.constant 2.500000e-01 : f32
    %221 = vector.broadcast %cst_113 : f32 to vector<8x128xf32>
    %222 = arith.mulf %220, %221 : vector<8x128xf32>
    %223 = arith.addf %222, %217 : vector<8x128xf32>
    %cst_114 = arith.constant 2.000000e-01 : f32
    %224 = vector.broadcast %cst_114 : f32 to vector<8x128xf32>
    %225 = arith.cmpf ogt, %223, %224 : vector<8x128xf32>
    %cst_115 = arith.constant 1.000000e+00 : f32
    %cst_116 = arith.constant 0.000000e+00 : f32
    %226 = vector.broadcast %cst_115 : f32 to vector<8x128xf32>
    %227 = vector.broadcast %cst_116 : f32 to vector<8x128xf32>
    %228 = arith.select %225, %226, %227 : vector<8x128xi1>, vector<8x128xf32>
    %229 = arith.addf %216, %228 : vector<8x128xf32>
    %c24_117 = arith.constant 24 : index
    %c0_118 = arith.constant 0 : index
    %230 = vector.load %arg10[%c24_117, %c0_118] : memref<80x128xf32, #tpu.memory_space<vmem>>, vector<8x128xf32>
    %cst_119 = arith.constant 2.000000e-01 : f32
    %231 = vector.broadcast %cst_119 : f32 to vector<8x128xf32>
    %232 = arith.mulf %228, %231 : vector<8x128xf32>
    %233 = arith.subf %223, %232 : vector<8x128xf32>
    %cst_120 = arith.constant 2.500000e-01 : f32
    %234 = vector.broadcast %cst_120 : f32 to vector<8x128xf32>
    %235 = arith.mulf %233, %234 : vector<8x128xf32>
    %236 = arith.addf %235, %230 : vector<8x128xf32>
    %cst_121 = arith.constant 2.000000e-01 : f32
    %237 = vector.broadcast %cst_121 : f32 to vector<8x128xf32>
    %238 = arith.cmpf ogt, %236, %237 : vector<8x128xf32>
    %cst_122 = arith.constant 1.000000e+00 : f32
    %cst_123 = arith.constant 0.000000e+00 : f32
    %239 = vector.broadcast %cst_122 : f32 to vector<8x128xf32>
    %240 = vector.broadcast %cst_123 : f32 to vector<8x128xf32>
    %241 = arith.select %238, %239, %240 : vector<8x128xi1>, vector<8x128xf32>
    %242 = arith.addf %229, %241 : vector<8x128xf32>
    %c32_124 = arith.constant 32 : index
    %c0_125 = arith.constant 0 : index
    %243 = vector.load %arg10[%c32_124, %c0_125] : memref<80x128xf32, #tpu.memory_space<vmem>>, vector<8x128xf32>
    %cst_126 = arith.constant 2.000000e-01 : f32
    %244 = vector.broadcast %cst_126 : f32 to vector<8x128xf32>
    %245 = arith.mulf %241, %244 : vector<8x128xf32>
    %246 = arith.subf %236, %245 : vector<8x128xf32>
    %cst_127 = arith.constant 2.500000e-01 : f32
    %247 = vector.broadcast %cst_127 : f32 to vector<8x128xf32>
    %248 = arith.mulf %246, %247 : vector<8x128xf32>
    %249 = arith.addf %248, %243 : vector<8x128xf32>
    %cst_128 = arith.constant 2.000000e-01 : f32
    %250 = vector.broadcast %cst_128 : f32 to vector<8x128xf32>
    %251 = arith.cmpf ogt, %249, %250 : vector<8x128xf32>
    %cst_129 = arith.constant 1.000000e+00 : f32
    %cst_130 = arith.constant 0.000000e+00 : f32
    %252 = vector.broadcast %cst_129 : f32 to vector<8x128xf32>
    %253 = vector.broadcast %cst_130 : f32 to vector<8x128xf32>
    %254 = arith.select %251, %252, %253 : vector<8x128xi1>, vector<8x128xf32>
    %255 = arith.addf %242, %254 : vector<8x128xf32>
    %c40_131 = arith.constant 40 : index
    %c0_132 = arith.constant 0 : index
    %256 = vector.load %arg10[%c40_131, %c0_132] : memref<80x128xf32, #tpu.memory_space<vmem>>, vector<8x128xf32>
    %cst_133 = arith.constant 2.000000e-01 : f32
    %257 = vector.broadcast %cst_133 : f32 to vector<8x128xf32>
    %258 = arith.mulf %254, %257 : vector<8x128xf32>
    %259 = arith.subf %249, %258 : vector<8x128xf32>
    %cst_134 = arith.constant 2.500000e-01 : f32
    %260 = vector.broadcast %cst_134 : f32 to vector<8x128xf32>
    %261 = arith.mulf %259, %260 : vector<8x128xf32>
    %262 = arith.addf %261, %256 : vector<8x128xf32>
    %cst_135 = arith.constant 2.000000e-01 : f32
    %263 = vector.broadcast %cst_135 : f32 to vector<8x128xf32>
    %264 = arith.cmpf ogt, %262, %263 : vector<8x128xf32>
    %cst_136 = arith.constant 1.000000e+00 : f32
    %cst_137 = arith.constant 0.000000e+00 : f32
    %265 = vector.broadcast %cst_136 : f32 to vector<8x128xf32>
    %266 = vector.broadcast %cst_137 : f32 to vector<8x128xf32>
    %267 = arith.select %264, %265, %266 : vector<8x128xi1>, vector<8x128xf32>
    %268 = arith.addf %255, %267 : vector<8x128xf32>
    %c48_138 = arith.constant 48 : index
    %c0_139 = arith.constant 0 : index
    %269 = vector.load %arg10[%c48_138, %c0_139] : memref<80x128xf32, #tpu.memory_space<vmem>>, vector<8x128xf32>
    %cst_140 = arith.constant 2.000000e-01 : f32
    %270 = vector.broadcast %cst_140 : f32 to vector<8x128xf32>
    %271 = arith.mulf %267, %270 : vector<8x128xf32>
    %272 = arith.subf %262, %271 : vector<8x128xf32>
    %cst_141 = arith.constant 2.500000e-01 : f32
    %273 = vector.broadcast %cst_141 : f32 to vector<8x128xf32>
    %274 = arith.mulf %272, %273 : vector<8x128xf32>
    %275 = arith.addf %274, %269 : vector<8x128xf32>
    %cst_142 = arith.constant 2.000000e-01 : f32
    %276 = vector.broadcast %cst_142 : f32 to vector<8x128xf32>
    %277 = arith.cmpf ogt, %275, %276 : vector<8x128xf32>
    %cst_143 = arith.constant 1.000000e+00 : f32
    %cst_144 = arith.constant 0.000000e+00 : f32
    %278 = vector.broadcast %cst_143 : f32 to vector<8x128xf32>
    %279 = vector.broadcast %cst_144 : f32 to vector<8x128xf32>
    %280 = arith.select %277, %278, %279 : vector<8x128xi1>, vector<8x128xf32>
    %281 = arith.addf %268, %280 : vector<8x128xf32>
    %c56_145 = arith.constant 56 : index
    %c0_146 = arith.constant 0 : index
    %282 = vector.load %arg10[%c56_145, %c0_146] : memref<80x128xf32, #tpu.memory_space<vmem>>, vector<8x128xf32>
    %cst_147 = arith.constant 2.000000e-01 : f32
    %283 = vector.broadcast %cst_147 : f32 to vector<8x128xf32>
    %284 = arith.mulf %280, %283 : vector<8x128xf32>
    %285 = arith.subf %275, %284 : vector<8x128xf32>
    %cst_148 = arith.constant 2.500000e-01 : f32
    %286 = vector.broadcast %cst_148 : f32 to vector<8x128xf32>
    %287 = arith.mulf %285, %286 : vector<8x128xf32>
    %288 = arith.addf %287, %282 : vector<8x128xf32>
    %cst_149 = arith.constant 2.000000e-01 : f32
    %289 = vector.broadcast %cst_149 : f32 to vector<8x128xf32>
    %290 = arith.cmpf ogt, %288, %289 : vector<8x128xf32>
    %cst_150 = arith.constant 1.000000e+00 : f32
    %cst_151 = arith.constant 0.000000e+00 : f32
    %291 = vector.broadcast %cst_150 : f32 to vector<8x128xf32>
    %292 = vector.broadcast %cst_151 : f32 to vector<8x128xf32>
    %293 = arith.select %290, %291, %292 : vector<8x128xi1>, vector<8x128xf32>
    %294 = arith.addf %281, %293 : vector<8x128xf32>
    %c64_152 = arith.constant 64 : index
    %c0_153 = arith.constant 0 : index
    %295 = vector.load %arg10[%c64_152, %c0_153] : memref<80x128xf32, #tpu.memory_space<vmem>>, vector<8x128xf32>
    %cst_154 = arith.constant 2.000000e-01 : f32
    %296 = vector.broadcast %cst_154 : f32 to vector<8x128xf32>
    %297 = arith.mulf %293, %296 : vector<8x128xf32>
    %298 = arith.subf %288, %297 : vector<8x128xf32>
    %cst_155 = arith.constant 2.500000e-01 : f32
    %299 = vector.broadcast %cst_155 : f32 to vector<8x128xf32>
    %300 = arith.mulf %298, %299 : vector<8x128xf32>
    %301 = arith.addf %300, %295 : vector<8x128xf32>
    %cst_156 = arith.constant 2.000000e-01 : f32
    %302 = vector.broadcast %cst_156 : f32 to vector<8x128xf32>
    %303 = arith.cmpf ogt, %301, %302 : vector<8x128xf32>
    %cst_157 = arith.constant 1.000000e+00 : f32
    %cst_158 = arith.constant 0.000000e+00 : f32
    %304 = vector.broadcast %cst_157 : f32 to vector<8x128xf32>
    %305 = vector.broadcast %cst_158 : f32 to vector<8x128xf32>
    %306 = arith.select %303, %304, %305 : vector<8x128xi1>, vector<8x128xf32>
    %307 = arith.addf %294, %306 : vector<8x128xf32>
    %c72_159 = arith.constant 72 : index
    %c0_160 = arith.constant 0 : index
    %308 = vector.load %arg10[%c72_159, %c0_160] : memref<80x128xf32, #tpu.memory_space<vmem>>, vector<8x128xf32>
    %cst_161 = arith.constant 2.000000e-01 : f32
    %309 = vector.broadcast %cst_161 : f32 to vector<8x128xf32>
    %310 = arith.mulf %306, %309 : vector<8x128xf32>
    %311 = arith.subf %301, %310 : vector<8x128xf32>
    %cst_162 = arith.constant 2.500000e-01 : f32
    %312 = vector.broadcast %cst_162 : f32 to vector<8x128xf32>
    %313 = arith.mulf %311, %312 : vector<8x128xf32>
    %314 = arith.addf %313, %308 : vector<8x128xf32>
    %cst_163 = arith.constant 2.000000e-01 : f32
    %315 = vector.broadcast %cst_163 : f32 to vector<8x128xf32>
    %316 = arith.cmpf ogt, %314, %315 : vector<8x128xf32>
    %cst_164 = arith.constant 1.000000e+00 : f32
    %cst_165 = arith.constant 0.000000e+00 : f32
    %317 = vector.broadcast %cst_164 : f32 to vector<8x128xf32>
    %318 = vector.broadcast %cst_165 : f32 to vector<8x128xf32>
    %319 = arith.select %316, %317, %318 : vector<8x128xi1>, vector<8x128xf32>
    %320 = arith.addf %307, %319 : vector<8x128xf32>
    %cst_166 = arith.constant 1.000000e-01 : f32
    %321 = vector.broadcast %cst_166 : f32 to vector<8x128xf32>
    %322 = arith.mulf %320, %321 : vector<8x128xf32>
    %c0_167 = arith.constant 0 : index
    %c0_168 = arith.constant 0 : index
    %323 = vector.load %arg7[%c0_167, %c0_168] : memref<8x128xf32, #tpu.memory_space<vmem>>, vector<8x128xf32>
    tpu.vector_store %arg7[%c0_167, %c0_168], %322 {strides = array<i32>} : memref<8x128xf32, #tpu.memory_space<vmem>>, vector<8x128xf32>,
    return
  }
  func.func @transform_0(%arg0: i32) -> i32 {
    %c0_i32 = arith.constant 0 : i32
    %c0_i32_0 = arith.constant 0 : i32
    return %c0_i32 : i32
  }
  func.func @transform_1(%arg0: i32) -> (i32, i32) {
    %c0_i32 = arith.constant 0 : i32
    %c0_i32_0 = arith.constant 0 : i32
    return %arg0, %c0_i32 : i32, i32
  }
  func.func @transform_2(%arg0: i32) -> (i32, i32) {
    %c0_i32 = arith.constant 0 : i32
    %c0_i32_0 = arith.constant 0 : i32
    %c0_i32_1 = arith.constant 0 : i32
    return %c0_i32, %c0_i32_0 : i32, i32
  }
  func.func @transform_3(%arg0: i32) -> (i32, i32) {
    %c0_i32 = arith.constant 0 : i32
    %c0_i32_0 = arith.constant 0 : i32
    %c0_i32_1 = arith.constant 0 : i32
    return %c0_i32, %c0_i32_0 : i32, i32
  }
  func.func @transform_4(%arg0: i32) -> (i32, i32) {
    %c0_i32 = arith.constant 0 : i32
    %c0_i32_0 = arith.constant 0 : i32
    %c0_i32_1 = arith.constant 0 : i32
    return %c0_i32, %c0_i32_0 : i32, i32
  }
  func.func @transform_5(%arg0: i32) -> (i32, i32) {
    %c0_i32 = arith.constant 0 : i32
    %c0_i32_0 = arith.constant 0 : i32
    %c0_i32_1 = arith.constant 0 : i32
    return %c0_i32, %c0_i32_0 : i32, i32
  }
  func.func @transform_6(%arg0: i32) -> (i32, i32) {
    %c0_i32 = arith.constant 0 : i32
    %c0_i32_0 = arith.constant 0 : i32
    return %arg0, %c0_i32 : i32, i32
  }
}

</mosaic_0001>

<llo_original>
// kernel: tpu_custom_call.1
$region0: #{tpu_custom_call.1}
  #allocation0 [shape = 'u32[]', space=smem, size = 0x4, offset = 0x4, fixed_abs, tag = 'smem constant byte address 0x4 - core index']
  #allocation1 [shape = 'u32[72,128]{1,0:T(1,128)}', space=vmem, size = 0x9000, scoped, tag = 'internal scratch']
  #allocation2 [shape = 'f32[80,128]{1,0:T(8,128)}', space=vmem, size = 0xa000, scoped, tag = 'scratch operand']
  #allocation3 [shape = 'f32[80,128]{1,0:T(8,128)}', space=vmem, size = 0xa000, scoped, tag = 'scratch operand']
  #allocation4 [shape = 'f32[80,128]{1,0:T(8,128)}', space=vmem, size = 0xa000, scoped, tag = 'scratch operand']
  #allocation5 [shape = 'f32[1]{0:T(128)S(6)}', space=smem, size = 0x200, scoped, tag = 'scoped memory for tpu_custom_call.1']
  %s0 = inlined_call_operand.<no memory space> [shape: f32[1], index: 0, kind: input, shape index: {}]
  %s1 = inlined_call_operand.hbm [shape: f32[160,256], index: 1, kind: input, shape index: {}]
  %s2 = inlined_call_operand.hbm [shape: f32[256,128], index: 2, kind: input, shape index: {}]
  %s3 = inlined_call_operand.vmem [shape: f32[1,128], index: 3, kind: input, shape index: {}]
  %s4 = inlined_call_operand.hbm [shape: f32[128,128], index: 4, kind: input, shape index: {}]
  %s5 = inlined_call_operand.vmem [shape: f32[1,128], index: 5, kind: input, shape index: {}]
  %s6 = inlined_call_operand.hbm [shape: f32[16,128], index: 6, kind: output, shape index: {}]
  %s7 = sld [smem:[#allocation0]]
  $region69: #{tpu_custom_call.1} parent=0
    _
  %s9 = ssub.s32 1, %s7
  %s10 = scalar_select 0, %s9, %s7
  %11 = sst [smem:[#allocation5]] %s0
  $region1: #{tpu_custom_call.1} parent=0
    #allocation6 [shape = 'u8[163840]{0}', space=vmem, size = 0x28000, scoped, tag = 'input window, operand 1']
    #allocation7 [shape = 's32[2]{0}', space=sflag, size = 0x8, scoped, tag = 'scoped memory for tpu_custom_call.1']
    #allocation8 [shape = 's32[2]{0}', space=sflag, size = 0x8, scoped, tag = 'scoped memory for tpu_custom_call.1']
    #allocation9 [shape = 'u8[131072]{0}', space=vmem, size = 0x20000, scoped, tag = 'input window, operand 2, single buffered']
    #allocation10 [shape = 's32[1]{0}', space=sflag, size = 0x4, scoped, tag = 'scoped memory for tpu_custom_call.1']
    #allocation11 [shape = 'u8[65536]{0}', space=vmem, size = 0x10000, scoped, tag = 'input window, operand 4, single buffered']
    #allocation12 [shape = 'u8[8192]{0}', space=vmem, size = 0x2000, scoped, tag = 'output window, operand 0']
    %12 = vsyncpa [#allocation7], 0
    %s13 = scalar_lea.sflag [#allocation7], 1
    %14 = vsyncpa %s13, 0
    %15 = vsyncpa [#allocation10], 0
    %16 = vsyncpa [#allocation8], 0
    %s17 = scalar_lea.sflag [#allocation8], 1
    %18 = vsyncpa %s17, 0
    loop: start=0, step=1, limit=4
    $region2: #{tpu_custom_call.1} parent=1 // loop_pre_header
      _
    $region3: #{tpu_custom_call.1} parent=1 // loop_header
      %s20 = sphi 0, %s24
      %p21 = scmp.ge.s32.totalorder %s20, 4
      %s28 = sphi 0, %s28
      %s30 = sphi 0, %s28
      %s31 = sphi 0, %s30
      %s45 = sphi 0, %s31
      %s51 = sphi 0, %s53
      %s54 = sphi 0, %s51
      %s55 = sphi 0, %s54
      %s71 = sphi 0, %s55
      %s75 = sphi 0, %s75
      %s77 = sphi 0, %s75
      %s78 = sphi 0, %s77
      %s92 = sphi 0, %s78
      %s96 = sphi 0, %s96
      %s98 = sphi 0, %s96
      %s99 = sphi 0, %s98
      %s113 = sphi 0, %s99
      %s117 = sphi 0, %s117
      %s119 = sphi 0, %s117
      %s120 = sphi 0, %s119
      %s134 = sphi 0, %s120
      %s138 = sphi 0, %s138
      %s140 = sphi 0, %s138
      %s141 = sphi 0, %s140
      %s155 = sphi 0, %s141
      %s161 = sphi 0, %s163
      %s164 = sphi 0, %s161
      %s165 = sphi 0, %s164
      %s181 = sphi 0, %s165
    $region4: #{tpu_custom_call.1} parent=1 // loop_header_branch
      %23 = sbr.rel (%p21) target = $region8
    $region5: #{tpu_custom_call.1} parent=1 // loop_body
      %s25 = ssub.s32 %s20, 1
      %s26 = ssub.s32 %s20, 2
      %s27 = sadd.s32 %s20, 1
      %s29 = sadd.s32 %s28, 1
      %p32 = scmp.eq.s32.totalorder %s20, 1
      %p33 = scmp.ne.s32.totalorder %s28, %s30
      %p34 = scmp.eq.s32.totalorder %s20, 0
      %p35 = por %p33, %p34
      %p36 = scmp.ne.s32.totalorder %s28, %s30
      %p37 = scmp.eq.s32.totalorder %s25, 1
      %p38 = por %p36, %p37
      %p39 = scmp.ne.s32.totalorder %s30, %s31
      %p40 = scmp.eq.s32.totalorder %s25, 0
      %p41 = por %p39, %p40
      %p42 = scmp.ne.s32.totalorder %s30, %s31
      %p43 = scmp.eq.s32.totalorder %s26, 1
      %p44 = por %p42, %p43
      %p46 = scmp.ne.s32.totalorder %s31, %s45
      %p47 = scmp.eq.s32.totalorder %s26, 0
      %p48 = por %p46, %p47
      %s49 = ssub.s32 %s20, %s27
      %p50 = scmp.eq.s32.totalorder %s49, 0
      %s52 = sadd.s32 %s51, 1
      %s53 = scalar_select %p50, %s51, %s52
      %p56 = pneg %p50
      %p57 = scmp.eq.s32.totalorder %s20, 1
      %p58 = por %p56, %p57
      %p59 = scmp.ne.s32.totalorder %s51, %s54
      %p60 = scmp.eq.s32.totalorder %s20, 0
      %p61 = por %p59, %p60
      %p62 = scmp.ne.s32.totalorder %s51, %s54
      %p63 = scmp.eq.s32.totalorder %s25, 1
      %p64 = por %p62, %p63
      %p65 = scmp.ne.s32.totalorder %s54, %s55
      %p66 = scmp.eq.s32.totalorder %s25, 0
      %p67 = por %p65, %p66
      %p68 = scmp.ne.s32.totalorder %s54, %s55
      %p69 = scmp.eq.s32.totalorder %s26, 1
      %p70 = por %p68, %p69
      %p72 = scmp.ne.s32.totalorder %s55, %s71
      %p73 = scmp.eq.s32.totalorder %s26, 0
      %p74 = por %p72, %p73
      %s76 = sadd.s32 %s75, 1
      %p79 = scmp.eq.s32.totalorder %s20, 1
      %p80 = scmp.ne.s32.totalorder %s75, %s77
      %p81 = scmp.eq.s32.totalorder %s20, 0
      %p82 = por %p80, %p81
      %p83 = scmp.ne.s32.totalorder %s75, %s77
      %p84 = scmp.eq.s32.totalorder %s25, 1
      %p85 = por %p83, %p84
      %p86 = scmp.ne.s32.totalorder %s77, %s78
      %p87 = scmp.eq.s32.totalorder %s25, 0
      %p88 = por %p86, %p87
      %p89 = scmp.ne.s32.totalorder %s77, %s78
      %p90 = scmp.eq.s32.totalorder %s26, 1
      %p91 = por %p89, %p90
      %p93 = scmp.ne.s32.totalorder %s78, %s92
      %p94 = scmp.eq.s32.totalorder %s26, 0
      %p95 = por %p93, %p94
      %s97 = sadd.s32 %s96, 1
      %p100 = scmp.eq.s32.totalorder %s20, 1
      %p101 = scmp.ne.s32.totalorder %s96, %s98
      %p102 = scmp.eq.s32.totalorder %s20, 0
      %p103 = por %p101, %p102
      %p104 = scmp.ne.s32.totalorder %s96, %s98
      %p105 = scmp.eq.s32.totalorder %s25, 1
      %p106 = por %p104, %p105
      %p107 = scmp.ne.s32.totalorder %s98, %s99
      %p108 = scmp.eq.s32.totalorder %s25, 0
      %p109 = por %p107, %p108
      %p110 = scmp.ne.s32.totalorder %s98, %s99
      %p111 = scmp.eq.s32.totalorder %s26, 1
      %p112 = por %p110, %p111
      %p114 = scmp.ne.s32.totalorder %s99, %s113
      %p115 = scmp.eq.s32.totalorder %s26, 0
      %p116 = por %p114, %p115
      %s118 = sadd.s32 %s117, 1
      %p121 = scmp.eq.s32.totalorder %s20, 1
      %p122 = scmp.ne.s32.totalorder %s117, %s119
      %p123 = scmp.eq.s32.totalorder %s20, 0
      %p124 = por %p122, %p123
      %p125 = scmp.ne.s32.totalorder %s117, %s119
      %p126 = scmp.eq.s32.totalorder %s25, 1
      %p127 = por %p125, %p126
      %p128 = scmp.ne.s32.totalorder %s119, %s120
      %p129 = scmp.eq.s32.totalorder %s25, 0
      %p130 = por %p128, %p129
      %p131 = scmp.ne.s32.totalorder %s119, %s120
      %p132 = scmp.eq.s32.totalorder %s26, 1
      %p133 = por %p131, %p132
      %p135 = scmp.ne.s32.totalorder %s120, %s134
      %p136 = scmp.eq.s32.totalorder %s26, 0
      %p137 = por %p135, %p136
      %s139 = sadd.s32 %s138, 1
      %p142 = scmp.eq.s32.totalorder %s20, 1
      %p143 = scmp.ne.s32.totalorder %s138, %s140
      %p144 = scmp.eq.s32.totalorder %s20, 0
      %p145 = por %p143, %p144
      %p146 = scmp.ne.s32.totalorder %s138, %s140
      %p147 = scmp.eq.s32.totalorder %s25, 1
      %p148 = por %p146, %p147
      %p149 = scmp.ne.s32.totalorder %s140, %s141
      %p150 = scmp.eq.s32.totalorder %s25, 0
      %p151 = por %p149, %p150
      %p152 = scmp.ne.s32.totalorder %s140, %s141
      %p153 = scmp.eq.s32.totalorder %s26, 1
      %p154 = por %p152, %p153
      %p156 = scmp.ne.s32.totalorder %s141, %s155
      %p157 = scmp.eq.s32.totalorder %s26, 0
      %p158 = por %p156, %p157
      %s159 = ssub.s32 %s20, %s27
      %p160 = scmp.eq.s32.totalorder %s159, 0
      %s162 = sadd.s32 %s161, 1
      %s163 = scalar_select %p160, %s161, %s162
      %p166 = pneg %p160
      %p167 = scmp.eq.s32.totalorder %s20, 1
      %p168 = por %p166, %p167
      %p169 = scmp.ne.s32.totalorder %s161, %s164
      %p170 = scmp.eq.s32.totalorder %s20, 0
      %p171 = por %p169, %p170
      %p172 = scmp.ne.s32.totalorder %s161, %s164
      %p173 = scmp.eq.s32.totalorder %s25, 1
      %p174 = por %p172, %p173
      %p175 = scmp.ne.s32.totalorder %s164, %s165
      %p176 = scmp.eq.s32.totalorder %s25, 0
      %p177 = por %p175, %p176
      %p178 = scmp.ne.s32.totalorder %s164, %s165
      %p179 = scmp.eq.s32.totalorder %s26, 1
      %p180 = por %p178, %p179
      %p182 = scmp.ne.s32.totalorder %s165, %s181
      %p183 = scmp.eq.s32.totalorder %s26, 0
      %p184 = por %p182, %p183
      %p185 = scmp.le.s32.totalorder 1, %s20
      %p186 = scmp.lt.s32.totalorder %s20, 3
      %p187 = pnand %p185, %p186
      %p188 = pneg %p187
      // Predicated region
      $region9: #{tpu_custom_call.1} parent=5 // pred_check
        _
      $region10: #{tpu_custom_call.1} parent=5 // pred_check_branch
        %190 = sbr.rel (%p187) target = $region12
      $region11: #{tpu_custom_call.1} parent=5 // pred_region
        %s191 = ssub.s32 %s20, 1
        // Predicated region
        $region13: #{tpu_custom_call.1} parent=11 // pred_check
          %p192 = pneg %p41
        $region14: #{tpu_custom_call.1} parent=11 // pred_check_branch
          %194 = sbr.rel (%p192) target = $region16
        $region15: #{tpu_custom_call.1} parent=11 // pred_region
          _
        $region16: #{tpu_custom_call.1} parent=11 // pred_fallthru
          _
        // Predicated region
        $region17: #{tpu_custom_call.1} parent=11 // pred_check
          %p195 = pneg %p88
        $region18: #{tpu_custom_call.1} parent=11 // pred_check_branch
          %197 = sbr.rel (%p195) target = $region20
        $region19: #{tpu_custom_call.1} parent=11 // pred_region
          %199 = vsyncadd [#allocation10], 0
          %s200 = sshll.u32 %s2, 4
          %s201 = int_to_ptr.hbm [resolvable:$true] %s200
          %s202 = sshll.u32 [#allocation9], 4
          %s203 = int_to_ptr.vmem [resolvable:$true] %s202
          %208 = dma.hbm_to_vmem [thread:$0]  %s201, 4096, %s203, [#allocation10], 128, 128, 8
        $region20: #{tpu_custom_call.1} parent=11 // pred_fallthru
          _
        // Predicated region
        $region21: #{tpu_custom_call.1} parent=11 // pred_check
          %p209 = pneg %p109
        $region22: #{tpu_custom_call.1} parent=11 // pred_check_branch
          %211 = sbr.rel (%p209) target = $region24
        $region23: #{tpu_custom_call.1} parent=11 // pred_region
          _
        $region24: #{tpu_custom_call.1} parent=11 // pred_fallthru
          _
        // Predicated region
        $region25: #{tpu_custom_call.1} parent=11 // pred_check
          %p212 = pneg %p130
        $region26: #{tpu_custom_call.1} parent=11 // pred_check_branch
          %214 = sbr.rel (%p212) target = $region28
        $region27: #{tpu_custom_call.1} parent=11 // pred_region
          %216 = vsyncadd [#allocation10], 0
          %s217 = sshll.u32 %s4, 4
          %s218 = int_to_ptr.hbm [resolvable:$true] %s217
          %s219 = sshll.u32 [#allocation11], 4
          %s220 = int_to_ptr.vmem [resolvable:$true] %s219
          %225 = dma.hbm_to_vmem [thread:$0]  %s218, 2048, %s220, [#allocation10], 128, 128, 8
        $region28: #{tpu_custom_call.1} parent=11 // pred_fallthru
          _
        // Predicated region
        $region29: #{tpu_custom_call.1} parent=11 // pred_check
          %p226 = pneg %p151
        $region30: #{tpu_custom_call.1} parent=11 // pred_check_branch
          %228 = sbr.rel (%p226) target = $region32
        $region31: #{tpu_custom_call.1} parent=11 // pred_region
          _
        $region32: #{tpu_custom_call.1} parent=11 // pred_fallthru
          _
      $region12: #{tpu_custom_call.1} parent=5 // pred_fallthru
        _
      %p229 = scmp.lt.s32.totalorder %s20, 2
      // Predicated region
      $region33: #{tpu_custom_call.1} parent=5 // pred_check
        %p230 = pneg %p229
      $region34: #{tpu_custom_call.1} parent=5 // pred_check_branch
        %232 = sbr.rel (%p230) target = $region36
      $region35: #{tpu_custom_call.1} parent=5 // pred_region
        // Predicated region
        $region37: #{tpu_custom_call.1} parent=35 // pred_check
          %p233 = pneg %p61
        $region38: #{tpu_custom_call.1} parent=35 // pred_check_branch
          %235 = sbr.rel (%p233) target = $region40
        $region39: #{tpu_custom_call.1} parent=35 // pred_region
          %s236 = sand.u32 %s51, 1
          %s237 = scalar_lea.sflag [#allocation7], %s236
          %s238 = sand.u32 %s51, 1
          %s239 = smul.addr %s238, 160
          %s240 = scalar_lea.vmem [#allocation6], %s239
          %s241 = smul.u32 10, %s20
          %243 = vsyncadd %s237, 0
          %s244 = smul.addr %s241, 2
          %s245 = smul.addr %s244, 8
          %s246 = scalar_lea.hbm %s1, %s245
          %s247 = sshll.u32 %s246, 4
          %s248 = int_to_ptr.hbm [resolvable:$true] %s247
          %s249 = sshll.u32 %s240, 4
          %s250 = int_to_ptr.vmem [resolvable:$true] %s249
          %255 = dma.hbm_to_vmem [thread:$0]  %s248, 2560, %s250, %s237, 256, 256, 16
        $region40: #{tpu_custom_call.1} parent=35 // pred_fallthru
          _
      $region36: #{tpu_custom_call.1} parent=5 // pred_fallthru
        _
      %p256 = scmp.le.s32.totalorder 1, %s20
      %p257 = scmp.lt.s32.totalorder %s20, 3
      %p258 = pnand %p256, %p257
      %p259 = pneg %p258
      // Predicated region
      $region41: #{tpu_custom_call.1} parent=5 // pred_check
        _
      $region42: #{tpu_custom_call.1} parent=5 // pred_check_branch
        %261 = sbr.rel (%p258) target = $region44
      $region43: #{tpu_custom_call.1} parent=5 // pred_region
        %s262 = ssub.s32 %s20, 1
        %s263 = sand.u32 %s54, 1
        %s264 = scalar_lea.sflag [#allocation7], %s263
        %s265 = sand.u32 %s54, 1
        %s266 = smul.addr %s265, 160
        %s267 = scalar_lea.vmem [#allocation6], %s266
        // Predicated region
        $region45: #{tpu_custom_call.1} parent=43 // pred_check
          %p268 = pneg %p67
        $region46: #{tpu_custom_call.1} parent=43 // pred_check_branch
          %270 = sbr.rel (%p268) target = $region48
        $region47: #{tpu_custom_call.1} parent=43 // pred_region
          %272 = dma.done %s264, 2560
        $region48: #{tpu_custom_call.1} parent=43 // pred_fallthru
          _
        // Predicated region
        $region49: #{tpu_custom_call.1} parent=43 // pred_check
          %p273 = pneg %p88
        $region50: #{tpu_custom_call.1} parent=43 // pred_check_branch
          %275 = sbr.rel (%p273) target = $region52
        $region51: #{tpu_custom_call.1} parent=43 // pred_region
          %277 = dma.done [#allocation10], 4096
        $region52: #{tpu_custom_call.1} parent=43 // pred_fallthru
          _
        // Predicated region
        $region53: #{tpu_custom_call.1} parent=43 // pred_check
          %p278 = pneg %p130
        $region54: #{tpu_custom_call.1} parent=43 // pred_check_branch
          %280 = sbr.rel (%p278) target = $region56
        $region55: #{tpu_custom_call.1} parent=43 // pred_region
          %282 = dma.done [#allocation10], 2048
        $region56: #{tpu_custom_call.1} parent=43 // pred_fallthru
          _
        %p283 = pneg %p41
        %p284 = pneg %p38
        %s285 = sand.u32 %s54, 1
        %s286 = scalar_lea.sflag [#allocation7], %s285
        %s287 = sand.u32 %s54, 1
        %s288 = smul.addr %s287, 160
        %s289 = scalar_lea.vmem [#allocation6], %s288
        %p290 = pneg %p67
        %p291 = pneg %p64
        %p292 = pneg %p88
        %p293 = pneg %p85
        %p294 = pneg %p109
        %p295 = pneg %p106
        %p296 = pneg %p130
        %p297 = pneg %p127
        %p298 = pneg %p151
        %p299 = pneg %p148
        %p300 = pneg %p177
        %p301 = pneg %p174
        %s302 = sand.u32 %s164, 1
        %s303 = scalar_lea.sflag [#allocation8], %s302
        %s304 = sand.u32 %s164, 1
        %s305 = smul.addr %s304, 8
        %s306 = scalar_lea.vmem [#allocation12], %s305
        %s307 = smul.u32 10, %s25
        %s308 = sld [smem:[#allocation5]]
        %v309 = vld [vmem:[%s267] sm:$0xff]
        %v310 = vld [vmem:[%s267 + $0x8] sm:$0xff]
        %v311 = vld [vmem:[%s267 + $0x10] sm:$0xff]
        %v312 = vld [vmem:[%s267 + $0x18] sm:$0xff]
        %v313 = vld [vmem:[%s267 + $0x20] sm:$0xff]
        %v314 = vld [vmem:[%s267 + $0x28] sm:$0xff]
        %v315 = vld [vmem:[%s267 + $0x30] sm:$0xff]
        %v316 = vld [vmem:[%s267 + $0x38] sm:$0xff]
        %v317 = vld [vmem:[%s267 + $0x40] sm:$0xff]
        %v318 = vld [vmem:[%s267 + $0x48] sm:$0xff]
        %v319 = vld [vmem:[%s267 + $0x50] sm:$0xff]
        %v320 = vld [vmem:[%s267 + $0x58] sm:$0xff]
        %v321 = vld [vmem:[%s267 + $0x60] sm:$0xff]
        %v322 = vld [vmem:[%s267 + $0x68] sm:$0xff]
        %v323 = vld [vmem:[%s267 + $0x70] sm:$0xff]
        %v324 = vld [vmem:[%s267 + $0x78] sm:$0xff]
        %v325 = vld [vmem:[%s267 + $0x80] sm:$0xff]
        %v326 = vld [vmem:[%s267 + $0x88] sm:$0xff]
        %v327 = vld [vmem:[%s267 + $0x90] sm:$0xff]
        %v328 = vld [vmem:[%s267 + $0x98] sm:$0xff]
        %v329 = vld [vmem:[#allocation9] sm:$0xff]
        %v330 = vld [vmem:[#allocation9 + $0x8] sm:$0xff]
        %v331 = vld [vmem:[#allocation9 + $0x10] sm:$0xff]
        %v332 = vld [vmem:[#allocation9 + $0x18] sm:$0xff]
        %v333 = vld [vmem:[#allocation9 + $0x20] sm:$0xff]
        %v334 = vld [vmem:[#allocation9 + $0x28] sm:$0xff]
        %v335 = vld [vmem:[#allocation9 + $0x30] sm:$0xff]
        %v336 = vld [vmem:[#allocation9 + $0x38] sm:$0xff]
        %v337 = vld [vmem:[#allocation9 + $0x40] sm:$0xff]
        %v338 = vld [vmem:[#allocation9 + $0x48] sm:$0xff]
        %v339 = vld [vmem:[#allocation9 + $0x50] sm:$0xff]
        %v340 = vld [vmem:[#allocation9 + $0x58] sm:$0xff]
        %v341 = vld [vmem:[#allocation9 + $0x60] sm:$0xff]
        %v342 = vld [vmem:[#allocation9 + $0x68] sm:$0xff]
        %v343 = vld [vmem:[#allocation9 + $0x70] sm:$0xff]
        %v344 = vld [vmem:[#allocation9 + $0x78] sm:$0xff]
        %v345 = vld [vmem:[#allocation9 + $0x80] sm:$0xff]
        %v346 = vld [vmem:[#allocation9 + $0x88] sm:$0xff]
        %v347 = vld [vmem:[#allocation9 + $0x90] sm:$0xff]
        %v348 = vld [vmem:[#allocation9 + $0x98] sm:$0xff]
        %v349 = vld [vmem:[#allocation9 + $0xa0] sm:$0xff]
        %v350 = vld [vmem:[#allocation9 + $0xa8] sm:$0xff]
        %v351 = vld [vmem:[#allocation9 + $0xb0] sm:$0xff]
        %v352 = vld [vmem:[#allocation9 + $0xb8] sm:$0xff]
        %v353 = vld [vmem:[#allocation9 + $0xc0] sm:$0xff]
        %v354 = vld [vmem:[#allocation9 + $0xc8] sm:$0xff]
        %v355 = vld [vmem:[#allocation9 + $0xd0] sm:$0xff]
        %v356 = vld [vmem:[#allocation9 + $0xd8] sm:$0xff]
        %v357 = vld [vmem:[#allocation9 + $0xe0] sm:$0xff]
        %v358 = vld [vmem:[#allocation9 + $0xe8] sm:$0xff]
        %v359 = vld [vmem:[#allocation9 + $0xf0] sm:$0xff]
        %v360 = vld [vmem:[#allocation9 + $0xf8] sm:$0xff]
        %v361 = vld [vmem:[%s3] sm:$0x1]
        %v363 = vperm.slane %v361, 0
        %365 = vmatpush.msra.mxu0 %v344
        %366 = vmatpush.msra.mxu0 %v343
        %367 = vmatpush.msra.mxu0 %v342
        %368 = vmatpush.msra.mxu0 %v341
        %369 = vmatpush.msra.mxu0 %v340
        %370 = vmatpush.msra.mxu0 %v339
        %371 = vmatpush.msra.mxu0 %v338
        %372 = vmatpush.msra.mxu0 %v337
        %373 = vmatpush.msra.mxu0 %v336
        %374 = vmatpush.msra.mxu0 %v335
        %375 = vmatpush.msra.mxu0 %v334
        %376 = vmatpush.msra.mxu0 %v333
        %377 = vmatpush.msra.mxu0 %v332
        %378 = vmatpush.msra.mxu0 %v331
        %379 = vmatpush.msra.mxu0 %v330
        %380 = vmatpush.msra.mxu0 %v329
        %381 = vmatmul.f32.gmra.mxu0 %v309
        %v382 = vpop.f32.mrf.mxu0
        %v383 = vadd.f32 %v363, %v382
        %384 = vmatmul.f32.gmra.mxu0 %v311
        %v385 = vpop.f32.mrf.mxu0
        %v386 = vadd.f32 %v363, %v385
        %387 = vmatmul.f32.gmra.mxu0 %v313
        %v388 = vpop.f32.mrf.mxu0
        %v389 = vadd.f32 %v363, %v388
        %390 = vmatmul.f32.gmra.mxu0 %v315
        %v391 = vpop.f32.mrf.mxu0
        %v392 = vadd.f32 %v363, %v391
        %393 = vmatmul.f32.gmra.mxu0 %v317
        %v394 = vpop.f32.mrf.mxu0
        %v395 = vadd.f32 %v363, %v394
        %396 = vmatmul.f32.gmra.mxu0 %v319
        %v397 = vpop.f32.mrf.mxu0
        %v398 = vadd.f32 %v363, %v397
        %399 = vmatmul.f32.gmra.mxu0 %v321
        %v400 = vpop.f32.mrf.mxu0
        %v401 = vadd.f32 %v363, %v400
        %402 = vmatmul.f32.gmra.mxu0 %v323
        %v403 = vpop.f32.mrf.mxu0
        %v404 = vadd.f32 %v363, %v403
        %405 = vmatmul.f32.gmra.mxu0 %v325
        %v406 = vpop.f32.mrf.mxu0
        %v407 = vadd.f32 %v363, %v406
        %408 = vmatmul.f32.gmra.mxu0 %v327
        %v409 = vpop.f32.mrf.mxu0
        %v410 = vadd.f32 %v363, %v409
        %411 = vdwg.mxu0
        %412 = vmatpush.msra.mxu0 %v360
        %413 = vmatpush.msra.mxu0 %v359
        %414 = vmatpush.msra.mxu0 %v358
        %415 = vmatpush.msra.mxu0 %v357
        %416 = vmatpush.msra.mxu0 %v356
        %417 = vmatpush.msra.mxu0 %v355
        %418 = vmatpush.msra.mxu0 %v354
        %419 = vmatpush.msra.mxu0 %v353
        %420 = vmatpush.msra.mxu0 %v352
        %421 = vmatpush.msra.mxu0 %v351
        %422 = vmatpush.msra.mxu0 %v350
        %423 = vmatpush.msra.mxu0 %v349
        %424 = vmatpush.msra.mxu0 %v348
        %425 = vmatpush.msra.mxu0 %v347
        %426 = vmatpush.msra.mxu0 %v346
        %427 = vmatpush.msra.mxu0 %v345
        %428 = vmatmul.f32.gmra.mxu0 %v310
        %v429 = vpop.f32.mrf.mxu0
        %v430 = vadd.f32 %v383, %v429
        %431 = vmatmul.f32.gmra.mxu0 %v312
        %v432 = vpop.f32.mrf.mxu0
        %v433 = vadd.f32 %v386, %v432
        %434 = vmatmul.f32.gmra.mxu0 %v314
        %v435 = vpop.f32.mrf.mxu0
        %v436 = vadd.f32 %v389, %v435
        %437 = vmatmul.f32.gmra.mxu0 %v316
        %v438 = vpop.f32.mrf.mxu0
        %v439 = vadd.f32 %v392, %v438
        %440 = vmatmul.f32.gmra.mxu0 %v318
        %v441 = vpop.f32.mrf.mxu0
        %v442 = vadd.f32 %v395, %v441
        %443 = vmatmul.f32.gmra.mxu0 %v320
        %v444 = vpop.f32.mrf.mxu0
        %v445 = vadd.f32 %v398, %v444
        %446 = vmatmul.f32.gmra.mxu0 %v322
        %v447 = vpop.f32.mrf.mxu0
        %v448 = vadd.f32 %v401, %v447
        %449 = vmatmul.f32.gmra.mxu0 %v324
        %v450 = vpop.f32.mrf.mxu0
        %v451 = vadd.f32 %v404, %v450
        %452 = vmatmul.f32.gmra.mxu0 %v326
        %v453 = vpop.f32.mrf.mxu0
        %v454 = vadd.f32 %v407, %v453
        %455 = vmatmul.f32.gmra.mxu0 %v328
        %v456 = vpop.f32.mrf.mxu0
        %v457 = vadd.f32 %v410, %v456
        %458 = vdwg.mxu0
        %459 = vst [vmem:[#allocation2] sm:$0xff] %v430
        %460 = vst [vmem:[#allocation2 + $0x8] sm:$0xff] %v433
        %461 = vst [vmem:[#allocation2 + $0x10] sm:$0xff] %v436
        %462 = vst [vmem:[#allocation2 + $0x18] sm:$0xff] %v439
        %463 = vst [vmem:[#allocation2 + $0x20] sm:$0xff] %v442
        %464 = vst [vmem:[#allocation2 + $0x28] sm:$0xff] %v445
        %465 = vst [vmem:[#allocation2 + $0x30] sm:$0xff] %v448
        %466 = vst [vmem:[#allocation2 + $0x38] sm:$0xff] %v451
        %467 = vst [vmem:[#allocation2 + $0x40] sm:$0xff] %v454
        %468 = vst [vmem:[#allocation2 + $0x48] sm:$0xff] %v457
        %v469 = vld [vmem:[#allocation2] ss:$10 sm:$0xff]
        %v470 = vadd.f32 %v469, 0.0
        %vm471 = vcmp.gt.f32.partialorder %v470, 0.2
        %v472 = vstv %s308
        %v473 = vsel %vm471, %v472, 0.0
        %v474 = vadd.f32 %v473, 0.0
        %v475 = vmul.f32 %v474, 0.5
        %v476 = vmul.f32 %v473, %v475
        %477 = vst [vmem:[#allocation3] sm:$0xff] %v476
        %s478 = scalar_lea.vmem [#allocation2], 1
        %v479 = vld [vmem:[%s478] ss:$10 sm:$0xff]
        %v480 = vmul.f32 %v476, 0.2
        %v481 = vsub.f32 %v470, %v480
        %v482 = vmul.f32 %v481, 0.25
        %v483 = vadd.f32 %v482, %v479
        %vm484 = vcmp.gt.f32.partialorder %v483, 0.2
        %v485 = vsel %vm484, %v472, 0.0
        %v486 = vadd.f32 %v474, %v485
        %v487 = vmul.f32 %v486, 0.5
        %v488 = vmul.f32 %v485, %v487
        %489 = vst [vmem:[#allocation3 + $0x8] sm:$0xff] %v488
        %s490 = scalar_lea.vmem [#allocation2], 2
        %v491 = vld [vmem:[%s490] ss:$10 sm:$0xff]
        %v492 = vmul.f32 %v488, 0.2
        %v493 = vsub.f32 %v483, %v492
        %v494 = vmul.f32 %v493, 0.25
        %v495 = vadd.f32 %v494, %v491
        %vm496 = vcmp.gt.f32.partialorder %v495, 0.2
        %v497 = vsel %vm496, %v472, 0.0
        %v498 = vadd.f32 %v486, %v497
        %v499 = vmul.f32 %v498, 0.5
        %v500 = vmul.f32 %v497, %v499
        %501 = vst [vmem:[#allocation3 + $0x10] sm:$0xff] %v500
        %s502 = scalar_lea.vmem [#allocation2], 3
        %v503 = vld [vmem:[%s502] ss:$10 sm:$0xff]
        %v504 = vmul.f32 %v500, 0.2
        %v505 = vsub.f32 %v495, %v504
        %v506 = vmul.f32 %v505, 0.25
        %v507 = vadd.f32 %v506, %v503
        %vm508 = vcmp.gt.f32.partialorder %v507, 0.2
        %v509 = vsel %vm508, %v472, 0.0
        %v510 = vadd.f32 %v498, %v509
        %v511 = vmul.f32 %v510, 0.5
        %v512 = vmul.f32 %v509, %v511
        %513 = vst [vmem:[#allocation3 + $0x18] sm:$0xff] %v512
        %s514 = scalar_lea.vmem [#allocation2], 4
        %v515 = vld [vmem:[%s514] ss:$10 sm:$0xff]
        %v516 = vmul.f32 %v512, 0.2
        %v517 = vsub.f32 %v507, %v516
        %v518 = vmul.f32 %v517, 0.25
        %v519 = vadd.f32 %v518, %v515
        %vm520 = vcmp.gt.f32.partialorder %v519, 0.2
        %v521 = vsel %vm520, %v472, 0.0
        %v522 = vadd.f32 %v510, %v521
        %v523 = vmul.f32 %v522, 0.5
        %v524 = vmul.f32 %v521, %v523
        %525 = vst [vmem:[#allocation3 + $0x20] sm:$0xff] %v524
        %s526 = scalar_lea.vmem [#allocation2], 5
        %v527 = vld [vmem:[%s526] ss:$10 sm:$0xff]
        %v528 = vmul.f32 %v524, 0.2
        %v529 = vsub.f32 %v519, %v528
        %v530 = vmul.f32 %v529, 0.25
        %v531 = vadd.f32 %v530, %v527
        %vm532 = vcmp.gt.f32.partialorder %v531, 0.2
        %v533 = vsel %vm532, %v472, 0.0
        %v534 = vadd.f32 %v522, %v533
        %v535 = vmul.f32 %v534, 0.5
        %v536 = vmul.f32 %v533, %v535
        %537 = vst [vmem:[#allocation3 + $0x28] sm:$0xff] %v536
        %s538 = scalar_lea.vmem [#allocation2], 6
        %v539 = vld [vmem:[%s538] ss:$10 sm:$0xff]
        %v540 = vmul.f32 %v536, 0.2
        %v541 = vsub.f32 %v531, %v540
        %v542 = vmul.f32 %v541, 0.25
        %v543 = vadd.f32 %v542, %v539
        %vm544 = vcmp.gt.f32.partialorder %v543, 0.2
        %v545 = vsel %vm544, %v472, 0.0
        %v546 = vadd.f32 %v534, %v545
        %v547 = vmul.f32 %v546, 0.5
        %v548 = vmul.f32 %v545, %v547
        %549 = vst [vmem:[#allocation3 + $0x30] sm:$0xff] %v548
        %s550 = scalar_lea.vmem [#allocation2], 7
        %v551 = vld [vmem:[%s550] ss:$10 sm:$0xff]
        %v552 = vmul.f32 %v548, 0.2
        %v553 = vsub.f32 %v543, %v552
        %v554 = vmul.f32 %v553, 0.25
        %v555 = vadd.f32 %v554, %v551
        %vm556 = vcmp.gt.f32.partialorder %v555, 0.2
        %v557 = vsel %vm556, %v472, 0.0
        %v558 = vadd.f32 %v546, %v557
        %v559 = vmul.f32 %v558, 0.5
        %v560 = vmul.f32 %v557, %v559
        %561 = vst [vmem:[#allocation3 + $0x38] sm:$0xff] %v560
        %s562 = scalar_lea.vmem [#allocation2], 8
        %v563 = vld [vmem:[%s562] ss:$10 sm:$0xff]
        %v564 = vmul.f32 %v560, 0.2
        %v565 = vsub.f32 %v555, %v564
        %v566 = vmul.f32 %v565, 0.25
        %v567 = vadd.f32 %v566, %v563
        %vm568 = vcmp.gt.f32.partialorder %v567, 0.2
        %v569 = vsel %vm568, %v472, 0.0
        %v570 = vadd.f32 %v558, %v569
        %v571 = vmul.f32 %v570, 0.5
        %v572 = vmul.f32 %v569, %v571
        %573 = vst [vmem:[#allocation3 + $0x40] sm:$0xff] %v572
        %s574 = scalar_lea.vmem [#allocation2], 9
        %v575 = vld [vmem:[%s574] ss:$10 sm:$0xff]
        %v576 = vmul.f32 %v572, 0.2
        %v577 = vsub.f32 %v567, %v576
        %v578 = vmul.f32 %v577, 0.25
        %v579 = vadd.f32 %v578, %v575
        %vm580 = vcmp.gt.f32.partialorder %v579, 0.2
        %v581 = vsel %vm580, %v472, 0.0
        %v582 = vadd.f32 %v570, %v581
        %v583 = vmul.f32 %v582, 0.5
        %v584 = vmul.f32 %v581, %v583
        %585 = vst [vmem:[#allocation3 + $0x48] sm:$0xff] %v584
        %v586 = vld [vmem:[#allocation3] sm:$0xff]
        %v587 = vld [vmem:[#allocation3 + $0x8] sm:$0xff]
        %v588 = vld [vmem:[#allocation3 + $0x10] sm:$0xff]
        %v589 = vld [vmem:[#allocation3 + $0x18] sm:$0xff]
        %v590 = vld [vmem:[#allocation3 + $0x20] sm:$0xff]
        %v591 = vld [vmem:[#allocation3 + $0x28] sm:$0xff]
        %v592 = vld [vmem:[#allocation3 + $0x30] sm:$0xff]
        %v593 = vld [vmem:[#allocation3 + $0x38] sm:$0xff]
        %v594 = vld [vmem:[#allocation3 + $0x40] sm:$0xff]
        %v595 = vld [vmem:[#allocation3 + $0x48] sm:$0xff]
        %v596 = vld [vmem:[#allocation11] sm:$0xff]
        %v597 = vld [vmem:[#allocation11 + $0x8] sm:$0xff]
        %v598 = vld [vmem:[#allocation11 + $0x10] sm:$0xff]
        %v599 = vld [vmem:[#allocation11 + $0x18] sm:$0xff]
        %v600 = vld [vmem:[#allocation11 + $0x20] sm:$0xff]
        %v601 = vld [vmem:[#allocation11 + $0x28] sm:$0xff]
        %v602 = vld [vmem:[#allocation11 + $0x30] sm:$0xff]
        %v603 = vld [vmem:[#allocation11 + $0x38] sm:$0xff]
        %v604 = vld [vmem:[#allocation11 + $0x40] sm:$0xff]
        %v605 = vld [vmem:[#allocation11 + $0x48] sm:$0xff]
        %v606 = vld [vmem:[#allocation11 + $0x50] sm:$0xff]
        %v607 = vld [vmem:[#allocation11 + $0x58] sm:$0xff]
        %v608 = vld [vmem:[#allocation11 + $0x60] sm:$0xff]
        %v609 = vld [vmem:[#allocation11 + $0x68] sm:$0xff]
        %v610 = vld [vmem:[#allocation11 + $0x70] sm:$0xff]
        %v611 = vld [vmem:[#allocation11 + $0x78] sm:$0xff]
        %v612 = vld [vmem:[%s5] sm:$0x1]
        %v614 = vperm.slane %v612, 0
        %616 = vmatpush.msra.mxu0 %v611
        %617 = vmatpush.msra.mxu0 %v610
        %618 = vmatpush.msra.mxu0 %v609
        %619 = vmatpush.msra.mxu0 %v608
        %620 = vmatpush.msra.mxu0 %v607
        %621 = vmatpush.msra.mxu0 %v606
        %622 = vmatpush.msra.mxu0 %v605
        %623 = vmatpush.msra.mxu0 %v604
        %624 = vmatpush.msra.mxu0 %v603
        %625 = vmatpush.msra.mxu0 %v602
        %626 = vmatpush.msra.mxu0 %v601
        %627 = vmatpush.msra.mxu0 %v600
        %628 = vmatpush.msra.mxu0 %v599
        %629 = vmatpush.msra.mxu0 %v598
        %630 = vmatpush.msra.mxu0 %v597
        %631 = vmatpush.msra.mxu0 %v596
        %632 = vmatmul.f32.gmra.mxu0 %v586
        %v633 = vpop.f32.mrf.mxu0
        %v634 = vadd.f32 %v614, %v633
        %635 = vmatmul.f32.gmra.mxu0 %v587
        %v636 = vpop.f32.mrf.mxu0
        %v637 = vadd.f32 %v614, %v636
        %638 = vmatmul.f32.gmra.mxu0 %v588
        %v639 = vpop.f32.mrf.mxu0
        %v640 = vadd.f32 %v614, %v639
        %641 = vmatmul.f32.gmra.mxu0 %v589
        %v642 = vpop.f32.mrf.mxu0
        %v643 = vadd.f32 %v614, %v642
        %644 = vmatmul.f32.gmra.mxu0 %v590
        %v645 = vpop.f32.mrf.mxu0
        %v646 = vadd.f32 %v614, %v645
        %647 = vmatmul.f32.gmra.mxu0 %v591
        %v648 = vpop.f32.mrf.mxu0
        %v649 = vadd.f32 %v614, %v648
        %650 = vmatmul.f32.gmra.mxu0 %v592
        %v651 = vpop.f32.mrf.mxu0
        %v652 = vadd.f32 %v614, %v651
        %653 = vmatmul.f32.gmra.mxu0 %v593
        %v654 = vpop.f32.mrf.mxu0
        %v655 = vadd.f32 %v614, %v654
        %656 = vmatmul.f32.gmra.mxu0 %v594
        %v657 = vpop.f32.mrf.mxu0
        %v658 = vadd.f32 %v614, %v657
        %659 = vmatmul.f32.gmra.mxu0 %v595
        %v660 = vpop.f32.mrf.mxu0
        %v661 = vadd.f32 %v614, %v660
        %662 = vdwg.mxu0
        %663 = vst [vmem:[#allocation4] sm:$0xff] %v634
        %664 = vst [vmem:[#allocation4 + $0x8] sm:$0xff] %v637
        %665 = vst [vmem:[#allocation4 + $0x10] sm:$0xff] %v640
        %666 = vst [vmem:[#allocation4 + $0x18] sm:$0xff] %v643
        %667 = vst [vmem:[#allocation4 + $0x20] sm:$0xff] %v646
        %668 = vst [vmem:[#allocation4 + $0x28] sm:$0xff] %v649
        %669 = vst [vmem:[#allocation4 + $0x30] sm:$0xff] %v652
        %670 = vst [vmem:[#allocation4 + $0x38] sm:$0xff] %v655
        %671 = vst [vmem:[#allocation4 + $0x40] sm:$0xff] %v658
        %672 = vst [vmem:[#allocation4 + $0x48] sm:$0xff] %v661
        %v673 = vld [vmem:[#allocation4] sm:$0xff]
        %v674 = vadd.f32 %v673, 0.0
        %vm675 = vcmp.gt.f32.partialorder %v674, 0.2
        %v676 = vsel %vm675, 1.0, 0.0
        %v677 = vadd.f32 %v676, 0.0
        %v678 = vld [vmem:[#allocation4 + $0x8] sm:$0xff]
        %v679 = vmul.f32 %v676, 0.2
        %v680 = vsub.f32 %v674, %v679
        %v681 = vmul.f32 %v680, 0.25
        %v682 = vadd.f32 %v681, %v678
        %vm683 = vcmp.gt.f32.partialorder %v682, 0.2
        %v684 = vsel %vm683, 1.0, 0.0
        %v685 = vadd.f32 %v677, %v684
        %v686 = vld [vmem:[#allocation4 + $0x10] sm:$0xff]
        %v687 = vmul.f32 %v684, 0.2
        %v688 = vsub.f32 %v682, %v687
        %v689 = vmul.f32 %v688, 0.25
        %v690 = vadd.f32 %v689, %v686
        %vm691 = vcmp.gt.f32.partialorder %v690, 0.2
        %v692 = vsel %vm691, 1.0, 0.0
        %v693 = vadd.f32 %v685, %v692
        %v694 = vld [vmem:[#allocation4 + $0x18] sm:$0xff]
        %v695 = vmul.f32 %v692, 0.2
        %v696 = vsub.f32 %v690, %v695
        %v697 = vmul.f32 %v696, 0.25
        %v698 = vadd.f32 %v697, %v694
        %vm699 = vcmp.gt.f32.partialorder %v698, 0.2
        %v700 = vsel %vm699, 1.0, 0.0
        %v701 = vadd.f32 %v693, %v700
        %v702 = vld [vmem:[#allocation4 + $0x20] sm:$0xff]
        %v703 = vmul.f32 %v700, 0.2
        %v704 = vsub.f32 %v698, %v703
        %v705 = vmul.f32 %v704, 0.25
        %v706 = vadd.f32 %v705, %v702
        %vm707 = vcmp.gt.f32.partialorder %v706, 0.2
        %v708 = vsel %vm707, 1.0, 0.0
        %v709 = vadd.f32 %v701, %v708
        %v710 = vld [vmem:[#allocation4 + $0x28] sm:$0xff]
        %v711 = vmul.f32 %v708, 0.2
        %v712 = vsub.f32 %v706, %v711
        %v713 = vmul.f32 %v712, 0.25
        %v714 = vadd.f32 %v713, %v710
        %vm715 = vcmp.gt.f32.partialorder %v714, 0.2
        %v716 = vsel %vm715, 1.0, 0.0
        %v717 = vadd.f32 %v709, %v716
        %v718 = vld [vmem:[#allocation4 + $0x30] sm:$0xff]
        %v719 = vmul.f32 %v716, 0.2
        %v720 = vsub.f32 %v714, %v719
        %v721 = vmul.f32 %v720, 0.25
        %v722 = vadd.f32 %v721, %v718
        %vm723 = vcmp.gt.f32.partialorder %v722, 0.2
        %v724 = vsel %vm723, 1.0, 0.0
        %v725 = vadd.f32 %v717, %v724
        %v726 = vld [vmem:[#allocation4 + $0x38] sm:$0xff]
        %v727 = vmul.f32 %v724, 0.2
        %v728 = vsub.f32 %v722, %v727
        %v729 = vmul.f32 %v728, 0.25
        %v730 = vadd.f32 %v729, %v726
        %vm731 = vcmp.gt.f32.partialorder %v730, 0.2
        %v732 = vsel %vm731, 1.0, 0.0
        %v733 = vadd.f32 %v725, %v732
        %v734 = vld [vmem:[#allocation4 + $0x40] sm:$0xff]
        %v735 = vmul.f32 %v732, 0.2
        %v736 = vsub.f32 %v730, %v735
        %v737 = vmul.f32 %v736, 0.25
        %v738 = vadd.f32 %v737, %v734
        %vm739 = vcmp.gt.f32.partialorder %v738, 0.2
        %v740 = vsel %vm739, 1.0, 0.0
        %v741 = vadd.f32 %v733, %v740
        %v742 = vld [vmem:[#allocation4 + $0x48] sm:$0xff]
        %v743 = vmul.f32 %v740, 0.2
        %v744 = vsub.f32 %v738, %v743
        %v745 = vmul.f32 %v744, 0.25
        %v746 = vadd.f32 %v745, %v742
        %vm747 = vcmp.gt.f32.partialorder %v746, 0.2
        %v748 = vsel %vm747, 1.0, 0.0
        %v749 = vadd.f32 %v741, %v748
        %v750 = vmul.f32 %v749, 0.1
        %751 = vst [vmem:[%s306] sm:$0xff] %v750
        %s752 = sand.u32 %s164, 1
        %s753 = scalar_lea.sflag [#allocation8], %s752
        %s754 = sand.u32 %s164, 1
        %s755 = smul.addr %s754, 8
        %s756 = scalar_lea.vmem [#allocation12], %s755
        // Predicated region
        $region57: #{tpu_custom_call.1} parent=43 // pred_check
          %p757 = pneg %p174
        $region58: #{tpu_custom_call.1} parent=43 // pred_check_branch
          %759 = sbr.rel (%p757) target = $region60
        $region59: #{tpu_custom_call.1} parent=43 // pred_region
          %761 = vsyncadd %s753, 0
          %s762 = smul.addr %s25, 8
          %s763 = scalar_lea.hbm %s6, %s762
          %s765 = sshll.u32 %s756, 4
          %s766 = int_to_ptr.vmem [resolvable:$true] %s765
          %s767 = sshll.u32 %s763, 4
          %s768 = int_to_ptr.hbm [resolvable:$true] %s767
          %770 = dma.vmem_to_hbm [thread:$0]  %s766, 128, %s768, %s753
        $region60: #{tpu_custom_call.1} parent=43 // pred_fallthru
          _
      $region44: #{tpu_custom_call.1} parent=5 // pred_fallthru
        _
      %p771 = scmp.le.s32.totalorder 2, %s20
      // Predicated region
      $region61: #{tpu_custom_call.1} parent=5 // pred_check
        %p772 = pneg %p771
      $region62: #{tpu_custom_call.1} parent=5 // pred_check_branch
        %774 = sbr.rel (%p772) target = $region64
      $region63: #{tpu_custom_call.1} parent=5 // pred_region
        %s775 = ssub.s32 %s20, 2
        // Predicated region
        $region65: #{tpu_custom_call.1} parent=63 // pred_check
          %p776 = pneg %p180
        $region66: #{tpu_custom_call.1} parent=63 // pred_check_branch
          %778 = sbr.rel (%p776) target = $region68
        $region67: #{tpu_custom_call.1} parent=63 // pred_region
          %s779 = sand.u32 %s165, 1
          %s780 = scalar_lea.sflag [#allocation8], %s779
          %s781 = sand.u32 %s165, 1
          %s782 = smul.addr %s781, 8
          %s783 = scalar_lea.vmem [#allocation12], %s782
          %785 = dma.done %s780, 128
        $region68: #{tpu_custom_call.1} parent=63 // pred_fallthru
          _
      $region64: #{tpu_custom_call.1} parent=5 // pred_fallthru
        _
    $region6: #{tpu_custom_call.1} parent=1 // loop_footer
      %s24 = sadd.s32 1, %s20
    $region7: #{tpu_custom_call.1} parent=1 // loop_footer_branch
      %19 = sbr.rel target = $region3
    $region8: #{tpu_custom_call.1} parent=1 // loop_exit
      _
    %786 = vsyncpa [#allocation7], 1
    %s787 = scalar_lea.sflag [#allocation7], 1
    %788 = vsyncpa %s787, 1
    %789 = vsyncpa [#allocation10], 1
    %790 = vsyncpa [#allocation8], 1
    %s791 = scalar_lea.sflag [#allocation8], 1
    %792 = vsyncpa %s791, 1

</llo_original>
